<compile_context>
chip_gen: v7x
topology: tpu7x:2x2x1
jax: 0.10.0
libtpu: 0.0.40
codegen_flags: <defaults>
</compile_context>

<pallas_src>
import jax
import jax.numpy as jnp
from jax.experimental import pallas as pl
from jax.experimental.pallas import tpu as pltpu

PATCH = 14
HIDDEN = 768          # dinov2-base hidden size (self.C = 768)
CIN = 3
EPS = 1e-6
MAX_TP = 1024         # max patch-tile rows (keeps VMEM well under v7x's 64 MiB)


def _round_up(x, m):
    return ((x + m - 1) // m) * m


def _cdiv(a, b):
    return -(-a // b)


def _choose_patch_tiling(P, N):
    """Pick (TP, num_p_blocks, P_pad) for the patch axis.

    Single full-extent block (no padding, no trailing slice) when P <= MAX_TP;
    otherwise 128-aligned tiles (lane-dense transposed store).  Forces >= 2 grid
    steps when possible so both v7x TensorCores have work.
    """
    nblk = _cdiv(P, MAX_TP)
    if N * nblk < 2 and P >= 256:      # v7x: 2 TensorCores -> want >= 2 grid steps
        nblk = 2
    if nblk == 1:
        return P, 1, P                 # full-dim block: exempt from (8,128) rule
    tp = _round_up(_cdiv(P, nblk), 128)
    nblk = _cdiv(P, tp)
    return tp, nblk, tp * nblk


def _stem_kernel(xp_ref, w_ref, posb_ref, g_ref, beta_ref, o_ref):
    # xp_ref:   (TP, Kp)   bf16   patch pixels (conv-weight order, zero-padded K)
    # w_ref:    (Kp, 768)  bf16   patch-embed weight
    # posb_ref: (TP, 768)  bf16   position embedding + folded conv bias
    # g_ref / beta_ref: (1, 768) f32 LayerNorm affine
    # o_ref:    (768, TP)  f32    transposed (channels-major) output tile
    y = jnp.dot(xp_ref[...], w_ref[...], preferred_element_type=jnp.float32)  # MXU, f32 acc
    y = y + posb_ref[...].astype(jnp.float32)
    # backbone LayerNorm over the channel dim (eps=1e-6), all math in f32
    mean = jnp.mean(y, axis=-1, keepdims=True)
    var = jnp.mean((y - mean) ** 2, axis=-1, keepdims=True)
    yn = (y - mean) * jax.lax.rsqrt(var + EPS)
    # transpose (TP,768)->(768,TP) on the XLU (slack in this mem-bound kernel) so the
    # wrapper never does an NCHW transpose over HBM.
    o_ref[...] = (yn * g_ref[...] + beta_ref[...]).T


def dinov2_base_stage0(x, params):
    """x: (N, 3, H, W) float32, H and W multiples of 14. Returns (N, 768, H/14, W/14)."""
    N, cin, H, W = x.shape
    assert cin == CIN and H % PATCH == 0 and W % PATCH == 0
    Hp, Wp = H // PATCH, W // PATCH
    P = Hp * Wp
    K = CIN * PATCH * PATCH                                 # 588
    # TODO(synk): bicubic pos-embed interpolation for resolutions != checkpoint grid.
    assert params["pos_embed"].shape[1] == P + 1, "pos_embed grid does not match image"

    TP, num_p, P_pad = _choose_patch_tiling(P, N)
    K_pad = _round_up(K, 128)                               # 640: lane-dense contraction

    # glue: cast to bf16 FIRST (halves patchify write bytes), extract 14x14 patches
    # flattened in conv-weight order (cin, kh, kw), pad P/K for tiling.
    patches = x.astype(jnp.bfloat16)
    patches = patches.reshape(N, CIN, Hp, PATCH, Wp, PATCH)
    patches = patches.transpose(0, 2, 4, 1, 3, 5).reshape(N, P, K)
    patches = jnp.pad(patches, ((0, 0), (0, P_pad - P), (0, K_pad - K)))

    w = params["conv_w"].reshape(HIDDEN, K).T               # (K, 768)
    w = jnp.pad(w, ((0, K_pad - K), (0, 0))).astype(jnp.bfloat16)

    # fold conv bias into position embeddings (CLS slot dropped); stream it as bf16
    posb = (params["pos_embed"][0, 1:, :] + params["conv_b"][None, :]).astype(jnp.bfloat16)
    posb = jnp.pad(posb, ((0, P_pad - P), (0, 0)))          # (P_pad, 768)

    g = params["ln_gamma"].reshape(1, HIDDEN).astype(jnp.float32)
    beta = params["ln_beta"].reshape(1, HIDDEN).astype(jnp.float32)

    out = pl.pallas_call(
        _stem_kernel,
        out_shape=jax.ShapeDtypeStruct((N, HIDDEN, P_pad), jnp.float32),
        grid=(num_p, N),                                    # batch innermost: posb/w/g/beta
        in_specs=[                                          # blocks not re-DMA'd per image
            pl.BlockSpec((None, TP, K_pad), lambda p, n: (n, p, 0)),   # patch tile
            pl.BlockSpec((K_pad, HIDDEN), lambda p, n: (0, 0)),        # patch-embed weight
            pl.BlockSpec((TP, HIDDEN), lambda p, n: (p, 0)),           # pos embed + bias
            pl.BlockSpec((1, HIDDEN), lambda p, n: (0, 0)),            # LN gamma
            pl.BlockSpec((1, HIDDEN), lambda p, n: (0, 0)),            # LN beta
        ],
        out_specs=pl.BlockSpec((None, HIDDEN, TP), lambda p, n: (n, 0, p)),
        compiler_params=pltpu.CompilerParams(
            dimension_semantics=("parallel", "parallel"),
            vmem_limit_bytes=48 * 1024 * 1024,              # headroom under v7x 64 MiB
        ),
    )(patches, w, posb, g, beta)

    # padded patch rows (LayerNormed garbage, finite) are sliced away if present
    if P_pad != P:
        out = out[:, :, :P]
    return out.reshape(N, HIDDEN, Hp, Wp)                   # already channels-major


def _reference(x, params, bf16_inputs):
    """Pure-jnp reference.  bf16_inputs=True mirrors the kernel's bf16-input /
    f32-accumulate matmul and bf16 pos-embed stream; False is the full-f32
    PyTorch-equivalent path."""
    N, _, H, W = x.shape
    Hp, Wp = H // PATCH, W // PATCH
    P = Hp * Wp
    K = CIN * PATCH * PATCH
    w = params["conv_w"].reshape(HIDDEN, K).T
    posb = params["pos_embed"][0, 1:, :] + params["conv_b"][None, :]
    if bf16_inputs:
        patches = x.astype(jnp.bfloat16)
        patches = patches.reshape(N, CIN, Hp, PATCH, Wp, PATCH)
        patches = patches.transpose(0, 2, 4, 1, 3, 5).reshape(N, P, K)
        y = jnp.einsum("npk,kc->npc", patches, w.astype(jnp.bfloat16),
                       preferred_element_type=jnp.float32)
        y = y + posb.astype(jnp.bfloat16).astype(jnp.float32)[None]
    else:
        patches = x.reshape(N, CIN, Hp, PATCH, Wp, PATCH)
        patches = patches.transpose(0, 2, 4, 1, 3, 5).reshape(N, P, K)
        y = jnp.einsum("npk,kc->npc", patches, w, precision=jax.lax.Precision.HIGHEST)
        y = y + posb[None]
    mean = jnp.mean(y, axis=-1, keepdims=True)
    var = jnp.mean((y - mean) ** 2, axis=-1, keepdims=True)
    yn = (y - mean) * jax.lax.rsqrt(var + EPS)
    yn = yn * params["ln_gamma"] + params["ln_beta"]
    return yn.reshape(N, Hp, Wp, HIDDEN).transpose(0, 3, 1, 2)


def make_params(key, num_patches):
    # deterministic synthetic parameters (shapes follow facebook/dinov2-base)
    k1, k2, k3, k4, k5 = jax.random.split(key, 5)
    return {
        "conv_w": 0.02 * jax.random.normal(k1, (HIDDEN, CIN, PATCH, PATCH), jnp.float32),
        "conv_b": 0.02 * jax.random.normal(k2, (HIDDEN,), jnp.float32),
        "pos_embed": 0.02 * jax.random.normal(k3, (1, num_patches + 1, HIDDEN), jnp.float32),
        "ln_gamma": 1.0 + 0.05 * jax.random.normal(k4, (HIDDEN,), jnp.float32),
        "ln_beta": 0.05 * jax.random.normal(k5, (HIDDEN,), jnp.float32),
    }


if __name__ == "__main__":
    key = jax.random.PRNGKey(0)
    kx, kp = jax.random.split(key)

    # small but consistent shapes: batch=2, RGB, 28x28 image -> 2x2 = 4 patches of 14x14
    N, H, W = 2, 28, 28
    x = jax.random.normal(kx, (N, CIN, H, W), jnp.float32)
    params = make_params(kp, num_patches=(H // PATCH) * (W // PATCH))

    fmap = jax.jit(dinov2_base_stage0)(x, params)
    fmap = jax.block_until_ready(fmap)
    assert fmap.shape == (N, HIDDEN, H // PATCH, W // PATCH), fmap.shape

    # 1) tight check against a reference using the identical bf16-input numeric path
    ref_bf16 = _reference(x, params, bf16_inputs=True)
    assert jnp.allclose(fmap, ref_bf16, rtol=1e-4, atol=1e-4), \
        "mismatch vs bf16-matched jnp reference"

    # 2) loose check against the full-f32 (PyTorch-equivalent) reference:
    #    only bf16 rounding of the matmul inputs / pos-embed separates the two.
    ref_f32 = _reference(x, params, bf16_inputs=False)
    assert jnp.allclose(fmap, ref_f32, rtol=2e-2, atol=2e-2), \
        "mismatch vs f32 jnp reference"

    print("KERNEL_OK")
</pallas_src>

<mosaic_0001>
module attributes {stable_mosaic.version = 11 : i64} {
  func.func @_stem_kernel(%arg0: i32, %arg1: i32, %arg2: memref<1x4x640xbf16, #tpu.memory_space<vmem>>, %arg3: memref<640x768xbf16, #tpu.memory_space<vmem>>, %arg4: memref<4x768xbf16, #tpu.memory_space<vmem>>, %arg5: memref<1x768xf32, #tpu.memory_space<vmem>>, %arg6: memref<1x768xf32, #tpu.memory_space<vmem>>, %arg7: memref<1x768x4xf32, #tpu.memory_space<vmem>>) attributes {dimension_semantics = [#tpu.dimension_semantics<parallel>, #tpu.dimension_semantics<parallel>], iteration_bounds = array<i64: 1, 2>, scalar_prefetch = 0 : i64, scratch_operands = 0 : i64, tpu.core_type = #tpu.core_type<tc>, window_params = [{transform_indices = @transform_0, window_bounds = array<i64: 1, 4, 640>}, {pipeline_mode = #tpu.pipeline_mode<synchronous>, transform_indices = @transform_1, window_bounds = array<i64: 640, 768>}, {transform_indices = @transform_2, window_bounds = array<i64: 4, 768>}, {pipeline_mode = #tpu.pipeline_mode<synchronous>, transform_indices = @transform_3, window_bounds = array<i64: 1, 768>}, {pipeline_mode = #tpu.pipeline_mode<synchronous>, transform_indices = @transform_4, window_bounds = array<i64: 1, 768>}, {transform_indices = @transform_5, window_bounds = array<i64: 1, 768, 4>}]} {
    %c0 = arith.constant 0 : index
    %c0_0 = arith.constant 0 : index
    %c0_1 = arith.constant 0 : index
    %0 = vector.load %arg2[%c0, %c0_0, %c0_1] : memref<1x4x640xbf16, #tpu.memory_space<vmem>>, vector<1x4x640xbf16>
    %1 = vector.shape_cast %0 : vector<1x4x640xbf16> to vector<4x640xbf16>
    %c0_2 = arith.constant 0 : index
    %c0_3 = arith.constant 0 : index
    %2 = vector.load %arg3[%c0_2, %c0_3] : memref<640x768xbf16, #tpu.memory_space<vmem>>, vector<640x768xbf16>
    %cst = arith.constant dense<0.000000e+00> : vector<4x768xf32>
    %3 = tpu.matmul %1, %2, %cst {dimension_numbers = #tpu.dot_dimension_numbers<[1], [0], [0], [1], [0, 0, 1, 1], [], []>} : vector<4x640xbf16>, vector<640x768xbf16>, vector<4x768xf32> -> vector<4x768xf32>
    %c0_4 = arith.constant 0 : index
    %c0_5 = arith.constant 0 : index
    %4 = vector.load %arg4[%c0_4, %c0_5] : memref<4x768xbf16, #tpu.memory_space<vmem>>, vector<4x768xbf16>
    %5 = arith.extf %4 : vector<4x768xbf16> to vector<4x768xf32>
    %6 = arith.addf %3, %5 : vector<4x768xf32>
    %cst_6 = arith.constant dense<0.000000e+00> : vector<4xf32>
    %7 = vector.multi_reduction <add>, %6, %cst_6 [1] : vector<4x768xf32> to vector<4xf32>
    %8 = vector.shape_cast %7 : vector<4xf32> to vector<4x1xf32>
    %cst_7 = arith.constant 7.680000e+02 : f32
    %9 = vector.broadcast %cst_7 : f32 to vector<4x1xf32>
    %10 = arith.divf %8, %9 : vector<4x1xf32>
    %11 = vector.broadcast %10 : vector<4x1xf32> to vector<4x768xf32>
    %12 = arith.subf %6, %11 : vector<4x768xf32>
    %13 = arith.mulf %12, %12 : vector<4x768xf32>
    %cst_8 = arith.constant dense<0.000000e+00> : vector<4xf32>
    %14 = vector.multi_reduction <add>, %13, %cst_8 [1] : vector<4x768xf32> to vector<4xf32>
    %15 = vector.shape_cast %14 : vector<4xf32> to vector<4x1xf32>
    %cst_9 = arith.constant 7.680000e+02 : f32
    %16 = vector.broadcast %cst_9 : f32 to vector<4x1xf32>
    %17 = arith.divf %15, %16 : vector<4x1xf32>
    %18 = vector.broadcast %10 : vector<4x1xf32> to vector<4x768xf32>
    %19 = arith.subf %6, %18 : vector<4x768xf32>
    %cst_10 = arith.constant 9.99999997E-7 : f32
    %20 = vector.broadcast %cst_10 : f32 to vector<4x1xf32>
    %21 = arith.addf %17, %20 : vector<4x1xf32>
    %22 = math.rsqrt %21 : vector<4x1xf32>
    %23 = vector.broadcast %22 : vector<4x1xf32> to vector<4x768xf32>
    %24 = arith.mulf %19, %23 : vector<4x768xf32>
    %c0_11 = arith.constant 0 : index
    %c0_12 = arith.constant 0 : index
    %25 = vector.load %arg5[%c0_11, %c0_12] : memref<1x768xf32, #tpu.memory_space<vmem>>, vector<1x768xf32>
    %26 = vector.broadcast %25 : vector<1x768xf32> to vector<4x768xf32>
    %27 = arith.mulf %24, %26 : vector<4x768xf32>
    %c0_13 = arith.constant 0 : index
    %c0_14 = arith.constant 0 : index
    %28 = vector.load %arg6[%c0_13, %c0_14] : memref<1x768xf32, #tpu.memory_space<vmem>>, vector<1x768xf32>
    %29 = vector.broadcast %28 : vector<1x768xf32> to vector<4x768xf32>
    %30 = arith.addf %27, %29 : vector<4x768xf32>
    %31 = tpu.transpose %30, [1, 0] : vector<4x768xf32> -> vector<768x4xf32>
    %c0_15 = arith.constant 0 : index
    %c0_16 = arith.constant 0 : index
    %c0_17 = arith.constant 0 : index
    %32 = vector.load %arg7[%c0_15, %c0_16, %c0_17] : memref<1x768x4xf32, #tpu.memory_space<vmem>>, vector<1x768x4xf32>
    %33 = vector.shape_cast %32 : vector<1x768x4xf32> to vector<768x4xf32>
    %34 = vector.shape_cast %31 : vector<768x4xf32> to vector<1x768x4xf32>
    tpu.vector_store %arg7[%c0_15, %c0_16, %c0_17], %34 {strides = array<i32>} : memref<1x768x4xf32, #tpu.memory_space<vmem>>, vector<1x768x4xf32>,
    return
  }
  func.func @transform_0(%arg0: i32, %arg1: i32) -> (i32, i32, i32) {
    %c0_i32 = arith.constant 0 : i32
    %c0_i32_0 = arith.constant 0 : i32
    return %arg1, %arg0, %c0_i32 : i32, i32, i32
  }
  func.func @transform_1(%arg0: i32, %arg1: i32) -> (i32, i32) {
    %c0_i32 = arith.constant 0 : i32
    %c0_i32_0 = arith.constant 0 : i32
    %c0_i32_1 = arith.constant 0 : i32
    return %c0_i32, %c0_i32_0 : i32, i32
  }
  func.func @transform_2(%arg0: i32, %arg1: i32) -> (i32, i32) {
    %c0_i32 = arith.constant 0 : i32
    %c0_i32_0 = arith.constant 0 : i32
    return %arg0, %c0_i32 : i32, i32
  }
  func.func @transform_3(%arg0: i32, %arg1: i32) -> (i32, i32) {
    %c0_i32 = arith.constant 0 : i32
    %c0_i32_0 = arith.constant 0 : i32
    %c0_i32_1 = arith.constant 0 : i32
    return %c0_i32, %c0_i32_0 : i32, i32
  }
  func.func @transform_4(%arg0: i32, %arg1: i32) -> (i32, i32) {
    %c0_i32 = arith.constant 0 : i32
    %c0_i32_0 = arith.constant 0 : i32
    %c0_i32_1 = arith.constant 0 : i32
    return %c0_i32, %c0_i32_0 : i32, i32
  }
  func.func @transform_5(%arg0: i32, %arg1: i32) -> (i32, i32, i32) {
    %c0_i32 = arith.constant 0 : i32
    %c0_i32_0 = arith.constant 0 : i32
    return %arg1, %c0_i32, %arg0 : i32, i32, i32
  }
}

</mosaic_0001>

<llo_original>
// kernel: dinov2_base_stage0.1
$region0: #{dinov2_base_stage0.1}
  #allocation0 [shape = 'u32[]', space=smem, size = 0x4, offset = 0x4, fixed_abs, tag = 'smem constant byte address 0x4 - core index']
  #allocation1 [shape = 'u32[144,128]{1,0:T(1,128)}', space=vmem, size = 0x12000, scoped, tag = 'internal scratch']
  %s0 = inlined_call_operand.vmem [shape: bf16[2,4,640], index: 0, kind: input, shape index: {}]
  %s1 = inlined_call_operand.vmem [shape: bf16[640,768], index: 1, kind: input, shape index: {}]
  %s2 = inlined_call_operand.vmem [shape: bf16[4,768], index: 2, kind: input, shape index: {}]
  %s3 = inlined_call_operand.vmem [shape: f32[1,768], index: 3, kind: input, shape index: {}]
  %s4 = inlined_call_operand.vmem [shape: f32[1,768], index: 4, kind: input, shape index: {}]
  %s5 = inlined_call_operand.vmem [shape: f32[2,768,4], index: 5, kind: output, shape index: {}]
  %s6 = sld [smem:[#allocation0]]
  $region53: #{dinov2_base_stage0.1} parent=0
    _
  %s8 = ssub.s32 1, %s6
  %s9 = scalar_select 0, %s8, %s6
  loop: start=0, step=1, limit=4
  $region2: #{dinov2_base_stage0.1} parent=0 // loop_pre_header
    _
  $region3: #{dinov2_base_stage0.1} parent=0 // loop_header
    %s11 = sphi 0, %s15
    %p12 = scmp.ge.s32.totalorder %s11, 4
    %s18 = sphi 0, %s30
    %s19 = sphi 0, %s26
    %s20 = sphi 0, %s18
    %s21 = sphi 0, %s19
    %s22 = sphi 0, %s20
    %s23 = sphi 0, %s21
    %s35 = sphi 0, %s37
    %s38 = sphi 0, %s35
    %s39 = sphi 0, %s38
    %s55 = sphi 0, %s39
    %s59 = sphi 0, %s59
    %s61 = sphi 0, %s59
    %s62 = sphi 0, %s61
    %s76 = sphi 0, %s62
    %s82 = sphi 0, %s84
    %s85 = sphi 0, %s82
    %s86 = sphi 0, %s85
    %s102 = sphi 0, %s86
    %s106 = sphi 0, %s106
    %s108 = sphi 0, %s106
    %s109 = sphi 0, %s108
    %s123 = sphi 0, %s109
    %s127 = sphi 0, %s127
    %s129 = sphi 0, %s127
    %s130 = sphi 0, %s129
    %s144 = sphi 0, %s130
    %s152 = sphi 0, %s154
    %s155 = sphi 0, %s152
    %s156 = sphi 0, %s155
    %s172 = sphi 0, %s156
  $region4: #{dinov2_base_stage0.1} parent=0 // loop_header_branch
    %14 = sbr.rel (%p12) target = $region8
  $region5: #{dinov2_base_stage0.1} parent=0 // loop_body
    %s16 = ssub.s32 %s11, 1
    %s17 = ssub.s32 %s11, 2
    %s24 = sadd.s32 1, %s19
    %p25 = scmp.ge.s32.totalorder %s24, 2
    %s26 = scalar_select %p25, 0, %s24
    %s27 = sadd.s32 1, %s18
    %s28 = scalar_select %p25, %s27, %s18
    %p29 = scmp.ge.s32.totalorder %s28, 1
    %s30 = scalar_select %p29, 0, %s28
    %s31 = ssub.s32 %s19, %s26
    %s32 = ssub.s32 %s18, %s30
    %s33 = sor.u32 %s31, %s32
    %p34 = scmp.eq.s32.totalorder %s33, 0
    %s36 = sadd.s32 %s35, 1
    %s37 = scalar_select %p34, %s35, %s36
    %p40 = pneg %p34
    %p41 = scmp.eq.s32.totalorder %s11, 1
    %p42 = por %p40, %p41
    %p43 = scmp.ne.s32.totalorder %s35, %s38
    %p44 = scmp.eq.s32.totalorder %s11, 0
    %p45 = por %p43, %p44
    %p46 = scmp.ne.s32.totalorder %s35, %s38
    %p47 = scmp.eq.s32.totalorder %s16, 1
    %p48 = por %p46, %p47
    %p49 = scmp.ne.s32.totalorder %s38, %s39
    %p50 = scmp.eq.s32.totalorder %s16, 0
    %p51 = por %p49, %p50
    %p52 = scmp.ne.s32.totalorder %s38, %s39
    %p53 = scmp.eq.s32.totalorder %s17, 1
    %p54 = por %p52, %p53
    %p56 = scmp.ne.s32.totalorder %s39, %s55
    %p57 = scmp.eq.s32.totalorder %s17, 0
    %p58 = por %p56, %p57
    %s60 = sadd.s32 %s59, 1
    %p63 = scmp.eq.s32.totalorder %s11, 1
    %p64 = scmp.ne.s32.totalorder %s59, %s61
    %p65 = scmp.eq.s32.totalorder %s11, 0
    %p66 = por %p64, %p65
    %p67 = scmp.ne.s32.totalorder %s59, %s61
    %p68 = scmp.eq.s32.totalorder %s16, 1
    %p69 = por %p67, %p68
    %p70 = scmp.ne.s32.totalorder %s61, %s62
    %p71 = scmp.eq.s32.totalorder %s16, 0
    %p72 = por %p70, %p71
    %p73 = scmp.ne.s32.totalorder %s61, %s62
    %p74 = scmp.eq.s32.totalorder %s17, 1
    %p75 = por %p73, %p74
    %p77 = scmp.ne.s32.totalorder %s62, %s76
    %p78 = scmp.eq.s32.totalorder %s17, 0
    %p79 = por %p77, %p78
    %s80 = ssub.s32 %s18, %s30
    %p81 = scmp.eq.s32.totalorder %s80, 0
    %s83 = sadd.s32 %s82, 1
    %s84 = scalar_select %p81, %s82, %s83
    %p87 = pneg %p81
    %p88 = scmp.eq.s32.totalorder %s11, 1
    %p89 = por %p87, %p88
    %p90 = scmp.ne.s32.totalorder %s82, %s85
    %p91 = scmp.eq.s32.totalorder %s11, 0
    %p92 = por %p90, %p91
    %p93 = scmp.ne.s32.totalorder %s82, %s85
    %p94 = scmp.eq.s32.totalorder %s16, 1
    %p95 = por %p93, %p94
    %p96 = scmp.ne.s32.totalorder %s85, %s86
    %p97 = scmp.eq.s32.totalorder %s16, 0
    %p98 = por %p96, %p97
    %p99 = scmp.ne.s32.totalorder %s85, %s86
    %p100 = scmp.eq.s32.totalorder %s17, 1
    %p101 = por %p99, %p100
    %p103 = scmp.ne.s32.totalorder %s86, %s102
    %p104 = scmp.eq.s32.totalorder %s17, 0
    %p105 = por %p103, %p104
    %s107 = sadd.s32 %s106, 1
    %p110 = scmp.eq.s32.totalorder %s11, 1
    %p111 = scmp.ne.s32.totalorder %s106, %s108
    %p112 = scmp.eq.s32.totalorder %s11, 0
    %p113 = por %p111, %p112
    %p114 = scmp.ne.s32.totalorder %s106, %s108
    %p115 = scmp.eq.s32.totalorder %s16, 1
    %p116 = por %p114, %p115
    %p117 = scmp.ne.s32.totalorder %s108, %s109
    %p118 = scmp.eq.s32.totalorder %s16, 0
    %p119 = por %p117, %p118
    %p120 = scmp.ne.s32.totalorder %s108, %s109
    %p121 = scmp.eq.s32.totalorder %s17, 1
    %p122 = por %p120, %p121
    %p124 = scmp.ne.s32.totalorder %s109, %s123
    %p125 = scmp.eq.s32.totalorder %s17, 0
    %p126 = por %p124, %p125
    %s128 = sadd.s32 %s127, 1
    %p131 = scmp.eq.s32.totalorder %s11, 1
    %p132 = scmp.ne.s32.totalorder %s127, %s129
    %p133 = scmp.eq.s32.totalorder %s11, 0
    %p134 = por %p132, %p133
    %p135 = scmp.ne.s32.totalorder %s127, %s129
    %p136 = scmp.eq.s32.totalorder %s16, 1
    %p137 = por %p135, %p136
    %p138 = scmp.ne.s32.totalorder %s129, %s130
    %p139 = scmp.eq.s32.totalorder %s16, 0
    %p140 = por %p138, %p139
    %p141 = scmp.ne.s32.totalorder %s129, %s130
    %p142 = scmp.eq.s32.totalorder %s17, 1
    %p143 = por %p141, %p142
    %p145 = scmp.ne.s32.totalorder %s130, %s144
    %p146 = scmp.eq.s32.totalorder %s17, 0
    %p147 = por %p145, %p146
    %s148 = ssub.s32 %s19, %s26
    %s149 = ssub.s32 %s18, %s30
    %s150 = sor.u32 %s148, %s149
    %p151 = scmp.eq.s32.totalorder %s150, 0
    %s153 = sadd.s32 %s152, 1
    %s154 = scalar_select %p151, %s152, %s153
    %p157 = pneg %p151
    %p158 = scmp.eq.s32.totalorder %s11, 1
    %p159 = por %p157, %p158
    %p160 = scmp.ne.s32.totalorder %s152, %s155
    %p161 = scmp.eq.s32.totalorder %s11, 0
    %p162 = por %p160, %p161
    %p163 = scmp.ne.s32.totalorder %s152, %s155
    %p164 = scmp.eq.s32.totalorder %s16, 1
    %p165 = por %p163, %p164
    %p166 = scmp.ne.s32.totalorder %s155, %s156
    %p167 = scmp.eq.s32.totalorder %s16, 0
    %p168 = por %p166, %p167
    %p169 = scmp.ne.s32.totalorder %s155, %s156
    %p170 = scmp.eq.s32.totalorder %s17, 1
    %p171 = por %p169, %p170
    %p173 = scmp.ne.s32.totalorder %s156, %s172
    %p174 = scmp.eq.s32.totalorder %s17, 0
    %p175 = por %p173, %p174
    %p176 = scmp.le.s32.totalorder 1, %s11
    %p177 = scmp.lt.s32.totalorder %s11, 3
    %p178 = pnand %p176, %p177
    %p179 = pneg %p178
    // Predicated region
    $region9: #{dinov2_base_stage0.1} parent=5 // pred_check
      _
    $region10: #{dinov2_base_stage0.1} parent=5 // pred_check_branch
      %181 = sbr.rel (%p178) target = $region12
    $region11: #{dinov2_base_stage0.1} parent=5 // pred_region
      %s182 = ssub.s32 %s11, 1
      // Predicated region
      $region13: #{dinov2_base_stage0.1} parent=11 // pred_check
        %p183 = pneg %p72
      $region14: #{dinov2_base_stage0.1} parent=11 // pred_check_branch
        %185 = sbr.rel (%p183) target = $region16
      $region15: #{dinov2_base_stage0.1} parent=11 // pred_region
        _
      $region16: #{dinov2_base_stage0.1} parent=11 // pred_fallthru
        _
      // Predicated region
      $region17: #{dinov2_base_stage0.1} parent=11 // pred_check
        %p186 = pneg %p98
      $region18: #{dinov2_base_stage0.1} parent=11 // pred_check_branch
        %188 = sbr.rel (%p186) target = $region20
      $region19: #{dinov2_base_stage0.1} parent=11 // pred_region
        %p189 = scmp.lt.s32.totalorder %s20, 0
        %s190 = scalar_select %p189, %s20, 0
        %s191 = smul.addr %s190, 6
        %s192 = smul.addr %s191, 2
        %s193 = scalar_lea.vmem %s2, %s192
      $region20: #{dinov2_base_stage0.1} parent=11 // pred_fallthru
        _
      // Predicated region
      $region21: #{dinov2_base_stage0.1} parent=11 // pred_check
        %p194 = pneg %p119
      $region22: #{dinov2_base_stage0.1} parent=11 // pred_check_branch
        %196 = sbr.rel (%p194) target = $region24
      $region23: #{dinov2_base_stage0.1} parent=11 // pred_region
        _
      $region24: #{dinov2_base_stage0.1} parent=11 // pred_fallthru
        _
      // Predicated region
      $region25: #{dinov2_base_stage0.1} parent=11 // pred_check
        %p197 = pneg %p140
      $region26: #{dinov2_base_stage0.1} parent=11 // pred_check_branch
        %199 = sbr.rel (%p197) target = $region28
      $region27: #{dinov2_base_stage0.1} parent=11 // pred_region
        _
      $region28: #{dinov2_base_stage0.1} parent=11 // pred_fallthru
        _
    $region12: #{dinov2_base_stage0.1} parent=5 // pred_fallthru
      _
    %p200 = scmp.lt.s32.totalorder %s11, 2
    // Predicated region
    $region29: #{dinov2_base_stage0.1} parent=5 // pred_check
      %p201 = pneg %p200
    $region30: #{dinov2_base_stage0.1} parent=5 // pred_check_branch
      %203 = sbr.rel (%p201) target = $region32
    $region31: #{dinov2_base_stage0.1} parent=5 // pred_region
      // Predicated region
      $region33: #{dinov2_base_stage0.1} parent=31 // pred_check
        %p204 = pneg %p45
      $region34: #{dinov2_base_stage0.1} parent=31 // pred_check_branch
        %206 = sbr.rel (%p204) target = $region36
      $region35: #{dinov2_base_stage0.1} parent=31 // pred_region
        %p207 = scmp.lt.s32.totalorder %s19, 1
        %s208 = scalar_select %p207, %s19, 1
        %p209 = scmp.lt.s32.totalorder %s18, 0
        %s210 = scalar_select %p209, %s18, 0
        %s211 = smul.addr %s210, 5
        %s212 = smul.addr %s208, 5
        %s213 = sadd.s32 %s211, %s212
        %s214 = smul.addr %s213, 2
        %s215 = scalar_lea.vmem %s0, %s214
      $region36: #{dinov2_base_stage0.1} parent=31 // pred_fallthru
        _
    $region32: #{dinov2_base_stage0.1} parent=5 // pred_fallthru
      _
    %p216 = scmp.le.s32.totalorder 1, %s11
    %p217 = scmp.lt.s32.totalorder %s11, 3
    %p218 = pnand %p216, %p217
    %p219 = pneg %p218
    // Predicated region
    $region37: #{dinov2_base_stage0.1} parent=5 // pred_check
      _
    $region38: #{dinov2_base_stage0.1} parent=5 // pred_check_branch
      %221 = sbr.rel (%p218) target = $region40
    $region39: #{dinov2_base_stage0.1} parent=5 // pred_region
      %s222 = ssub.s32 %s11, 1
      %p223 = scmp.lt.s32.totalorder %s21, 1
      %s224 = scalar_select %p223, %s21, 1
      %p225 = scmp.lt.s32.totalorder %s20, 0
      %s226 = scalar_select %p225, %s20, 0
      %s227 = smul.addr %s226, 5
      %s228 = smul.addr %s224, 5
      %s229 = sadd.s32 %s227, %s228
      %s230 = smul.addr %s229, 2
      %s231 = scalar_lea.vmem %s0, %s230
      %p232 = pneg %p51
      %p233 = pneg %p48
      %p234 = pneg %p72
      %p235 = pneg %p69
      %p236 = scmp.lt.s32.totalorder %s20, 0
      %s237 = scalar_select %p236, %s20, 0
      %s238 = smul.addr %s237, 6
      %s239 = smul.addr %s238, 2
      %s240 = scalar_lea.vmem %s2, %s239
      %p241 = pneg %p98
      %p242 = pneg %p95
      %p243 = pneg %p119
      %p244 = pneg %p116
      %p245 = pneg %p140
      %p246 = pneg %p137
      %p247 = pneg %p168
      %p248 = pneg %p165
      %p249 = scmp.lt.s32.totalorder %s21, 1
      %s250 = scalar_select %p249, %s21, 1
      %p251 = scmp.lt.s32.totalorder %s20, 0
      %s252 = scalar_select %p251, %s20, 0
      %s253 = smul.addr %s250, 96
      %s254 = sadd.s32 %s252, %s253
      %s255 = smul.addr %s254, 8
      %s256 = scalar_lea.vmem %s5, %s255
      %p257 = scmp.lt.s32.totalorder %s21, 1
      %s258 = scalar_select %p257, %s21, 1
      %p259 = scmp.lt.s32.totalorder %s20, 0
      %s260 = scalar_select %p259, %s20, 0
      %s261 = smul.addr %s260, 5
      %s262 = smul.addr %s258, 5
      %s263 = sadd.s32 %s261, %s262
      %s264 = smul.addr %s263, 2
      %s265 = scalar_lea.vmem %s0, %s264
      %p266 = scmp.lt.s32.totalorder %s20, 0
      %s267 = scalar_select %p266, %s20, 0
      %s268 = smul.addr %s267, 6
      %s269 = smul.addr %s268, 2
      %s270 = scalar_lea.vmem %s2, %s269
      %p271 = scmp.lt.s32.totalorder %s21, 1
      %s272 = scalar_select %p271, %s21, 1
      %p273 = scmp.lt.s32.totalorder %s20, 0
      %s274 = scalar_select %p273, %s20, 0
      %s275 = smul.addr %s272, 96
      %s276 = sadd.s32 %s274, %s275
      %s277 = smul.addr %s276, 8
      %s278 = scalar_lea.vmem %s5, %s277
      %v280 = vld [vmem:[%s265] sm:$0xff]
      %v281 = vld [vmem:[%s265 + $0x8] sm:$0x3]
      %v282 = vld [vmem:[%s1] sm:$0xff]
      %v283 = vld [vmem:[%s1 + $0x8] sm:$0xff]
      %v284 = vld [vmem:[%s1 + $0x10] sm:$0xff]
      %v285 = vld [vmem:[%s1 + $0x18] sm:$0xff]
      %v286 = vld [vmem:[%s1 + $0x20] sm:$0xff]
      %v287 = vld [vmem:[%s1 + $0x28] sm:$0xff]
      %v288 = vld [vmem:[%s1 + $0x30] sm:$0xff]
      %v289 = vld [vmem:[%s1 + $0x38] sm:$0xff]
      %v290 = vld [vmem:[%s1 + $0x40] sm:$0xff]
      %v291 = vld [vmem:[%s1 + $0x48] sm:$0xff]
      %v292 = vld [vmem:[%s1 + $0x50] sm:$0xff]
      %v293 = vld [vmem:[%s1 + $0x58] sm:$0xff]
      %v294 = vld [vmem:[%s1 + $0x60] sm:$0xff]
      %v295 = vld [vmem:[%s1 + $0x68] sm:$0xff]
      %v296 = vld [vmem:[%s1 + $0x70] sm:$0xff]
      %v297 = vld [vmem:[%s1 + $0x78] sm:$0xff]
      %v298 = vld [vmem:[%s1 + $0x80] sm:$0xff]
      %v299 = vld [vmem:[%s1 + $0x88] sm:$0xff]
      %v300 = vld [vmem:[%s1 + $0x90] sm:$0xff]
      %v301 = vld [vmem:[%s1 + $0x98] sm:$0xff]
      %v302 = vld [vmem:[%s1 + $0xa0] sm:$0xff]
      %v303 = vld [vmem:[%s1 + $0xa8] sm:$0xff]
      %v304 = vld [vmem:[%s1 + $0xb0] sm:$0xff]
      %v305 = vld [vmem:[%s1 + $0xb8] sm:$0xff]
      %v306 = vld [vmem:[%s1 + $0xc0] sm:$0xff]
      %v307 = vld [vmem:[%s1 + $0xc8] sm:$0xff]
      %v308 = vld [vmem:[%s1 + $0xd0] sm:$0xff]
      %v309 = vld [vmem:[%s1 + $0xd8] sm:$0xff]
      %v310 = vld [vmem:[%s1 + $0xe0] sm:$0xff]
      %v311 = vld [vmem:[%s1 + $0xe8] sm:$0xff]
      %v312 = vld [vmem:[%s1 + $0xf0] sm:$0xff]
      %v313 = vld [vmem:[%s1 + $0xf8] sm:$0xff]
      %v314 = vld [vmem:[%s1 + $0x100] sm:$0xff]
      %v315 = vld [vmem:[%s1 + $0x108] sm:$0xff]
      %v316 = vld [vmem:[%s1 + $0x110] sm:$0xff]
      %v317 = vld [vmem:[%s1 + $0x118] sm:$0xff]
      %v318 = vld [vmem:[%s1 + $0x120] sm:$0xff]
      %v319 = vld [vmem:[%s1 + $0x128] sm:$0xff]
      %v320 = vld [vmem:[%s1 + $0x130] sm:$0xff]
      %v321 = vld [vmem:[%s1 + $0x138] sm:$0xff]
      %v322 = vld [vmem:[%s1 + $0x140] sm:$0xff]
      %v323 = vld [vmem:[%s1 + $0x148] sm:$0xff]
      %v324 = vld [vmem:[%s1 + $0x150] sm:$0xff]
      %v325 = vld [vmem:[%s1 + $0x158] sm:$0xff]
      %v326 = vld [vmem:[%s1 + $0x160] sm:$0xff]
      %v327 = vld [vmem:[%s1 + $0x168] sm:$0xff]
      %v328 = vld [vmem:[%s1 + $0x170] sm:$0xff]
      %v329 = vld [vmem:[%s1 + $0x178] sm:$0xff]
      %v330 = vld [vmem:[%s1 + $0x180] sm:$0xff]
      %v331 = vld [vmem:[%s1 + $0x188] sm:$0xff]
      %v332 = vld [vmem:[%s1 + $0x190] sm:$0xff]
      %v333 = vld [vmem:[%s1 + $0x198] sm:$0xff]
      %v334 = vld [vmem:[%s1 + $0x1a0] sm:$0xff]
      %v335 = vld [vmem:[%s1 + $0x1a8] sm:$0xff]
      %v336 = vld [vmem:[%s1 + $0x1b0] sm:$0xff]
      %v337 = vld [vmem:[%s1 + $0x1b8] sm:$0xff]
      %v338 = vld [vmem:[%s1 + $0x1c0] sm:$0xff]
      %v339 = vld [vmem:[%s1 + $0x1c8] sm:$0xff]
      %v340 = vld [vmem:[%s1 + $0x1d0] sm:$0xff]
      %v341 = vld [vmem:[%s1 + $0x1d8] sm:$0xff]
      %v342 = vld [vmem:[%s1 + $0x1e0] sm:$0xff]
      %v343 = vld [vmem:[%s1 + $0x1e8] sm:$0xff]
      %v344 = vld [vmem:[%s1 + $0x1f0] sm:$0xff]
      %v345 = vld [vmem:[%s1 + $0x1f8] sm:$0xff]
      %v346 = vld [vmem:[%s1 + $0x200] sm:$0xff]
      %v347 = vld [vmem:[%s1 + $0x208] sm:$0xff]
      %v348 = vld [vmem:[%s1 + $0x210] sm:$0xff]
      %v349 = vld [vmem:[%s1 + $0x218] sm:$0xff]
      %v350 = vld [vmem:[%s1 + $0x220] sm:$0xff]
      %v351 = vld [vmem:[%s1 + $0x228] sm:$0xff]
      %v352 = vld [vmem:[%s1 + $0x230] sm:$0xff]
      %v353 = vld [vmem:[%s1 + $0x238] sm:$0xff]
      %v354 = vld [vmem:[%s1 + $0x240] sm:$0xff]
      %v355 = vld [vmem:[%s1 + $0x248] sm:$0xff]
      %v356 = vld [vmem:[%s1 + $0x250] sm:$0xff]
      %v357 = vld [vmem:[%s1 + $0x258] sm:$0xff]
      %v358 = vld [vmem:[%s1 + $0x260] sm:$0xff]
      %v359 = vld [vmem:[%s1 + $0x268] sm:$0xff]
      %v360 = vld [vmem:[%s1 + $0x270] sm:$0xff]
      %v361 = vld [vmem:[%s1 + $0x278] sm:$0xff]
      %v362 = vld [vmem:[%s1 + $0x280] sm:$0xff]
      %v363 = vld [vmem:[%s1 + $0x288] sm:$0xff]
      %v364 = vld [vmem:[%s1 + $0x290] sm:$0xff]
      %v365 = vld [vmem:[%s1 + $0x298] sm:$0xff]
      %v366 = vld [vmem:[%s1 + $0x2a0] sm:$0xff]
      %v367 = vld [vmem:[%s1 + $0x2a8] sm:$0xff]
      %v368 = vld [vmem:[%s1 + $0x2b0] sm:$0xff]
      %v369 = vld [vmem:[%s1 + $0x2b8] sm:$0xff]
      %v370 = vld [vmem:[%s1 + $0x2c0] sm:$0xff]
      %v371 = vld [vmem:[%s1 + $0x2c8] sm:$0xff]
      %v372 = vld [vmem:[%s1 + $0x2d0] sm:$0xff]
      %v373 = vld [vmem:[%s1 + $0x2d8] sm:$0xff]
      %v374 = vld [vmem:[%s1 + $0x2e0] sm:$0xff]
      %v375 = vld [vmem:[%s1 + $0x2e8] sm:$0xff]
      %v376 = vld [vmem:[%s1 + $0x2f0] sm:$0xff]
      %v377 = vld [vmem:[%s1 + $0x2f8] sm:$0xff]
      %v378 = vld [vmem:[%s1 + $0x300] sm:$0xff]
      %v379 = vld [vmem:[%s1 + $0x308] sm:$0xff]
      %v380 = vld [vmem:[%s1 + $0x310] sm:$0xff]
      %v381 = vld [vmem:[%s1 + $0x318] sm:$0xff]
      %v382 = vld [vmem:[%s1 + $0x320] sm:$0xff]
      %v383 = vld [vmem:[%s1 + $0x328] sm:$0xff]
      %v384 = vld [vmem:[%s1 + $0x330] sm:$0xff]
      %v385 = vld [vmem:[%s1 + $0x338] sm:$0xff]
      %v386 = vld [vmem:[%s1 + $0x340] sm:$0xff]
      %v387 = vld [vmem:[%s1 + $0x348] sm:$0xff]
      %v388 = vld [vmem:[%s1 + $0x350] sm:$0xff]
      %v389 = vld [vmem:[%s1 + $0x358] sm:$0xff]
      %v390 = vld [vmem:[%s1 + $0x360] sm:$0xff]
      %v391 = vld [vmem:[%s1 + $0x368] sm:$0xff]
      %v392 = vld [vmem:[%s1 + $0x370] sm:$0xff]
      %v393 = vld [vmem:[%s1 + $0x378] sm:$0xff]
      %v394 = vld [vmem:[%s1 + $0x380] sm:$0xff]
      %v395 = vld [vmem:[%s1 + $0x388] sm:$0xff]
      %v396 = vld [vmem:[%s1 + $0x390] sm:$0xff]
      %v397 = vld [vmem:[%s1 + $0x398] sm:$0xff]
      %v398 = vld [vmem:[%s1 + $0x3a0] sm:$0xff]
      %v399 = vld [vmem:[%s1 + $0x3a8] sm:$0xff]
      %v400 = vld [vmem:[%s1 + $0x3b0] sm:$0xff]
      %v401 = vld [vmem:[%s1 + $0x3b8] sm:$0xff]
      %v402 = vld [vmem:[%s1 + $0x3c0] sm:$0xff]
      %v403 = vld [vmem:[%s1 + $0x3c8] sm:$0xff]
      %v404 = vld [vmem:[%s1 + $0x3d0] sm:$0xff]
      %v405 = vld [vmem:[%s1 + $0x3d8] sm:$0xff]
      %v406 = vld [vmem:[%s1 + $0x3e0] sm:$0xff]
      %v407 = vld [vmem:[%s1 + $0x3e8] sm:$0xff]
      %v408 = vld [vmem:[%s1 + $0x3f0] sm:$0xff]
      %v409 = vld [vmem:[%s1 + $0x3f8] sm:$0xff]
      %v410 = vld [vmem:[%s1 + $0x400] sm:$0xff]
      %v411 = vld [vmem:[%s1 + $0x408] sm:$0xff]
      %v412 = vld [vmem:[%s1 + $0x410] sm:$0xff]
      %v413 = vld [vmem:[%s1 + $0x418] sm:$0xff]
      %v414 = vld [vmem:[%s1 + $0x420] sm:$0xff]
      %v415 = vld [vmem:[%s1 + $0x428] sm:$0xff]
      %v416 = vld [vmem:[%s1 + $0x430] sm:$0xff]
      %v417 = vld [vmem:[%s1 + $0x438] sm:$0xff]
      %v418 = vld [vmem:[%s1 + $0x440] sm:$0xff]
      %v419 = vld [vmem:[%s1 + $0x448] sm:$0xff]
      %v420 = vld [vmem:[%s1 + $0x450] sm:$0xff]
      %v421 = vld [vmem:[%s1 + $0x458] sm:$0xff]
      %v422 = vld [vmem:[%s1 + $0x460] sm:$0xff]
      %v423 = vld [vmem:[%s1 + $0x468] sm:$0xff]
      %v424 = vld [vmem:[%s1 + $0x470] sm:$0xff]
      %v425 = vld [vmem:[%s1 + $0x478] sm:$0xff]
      %v426 = vld [vmem:[%s1 + $0x480] sm:$0xff]
      %v427 = vld [vmem:[%s1 + $0x488] sm:$0xff]
      %v428 = vld [vmem:[%s1 + $0x490] sm:$0xff]
      %v429 = vld [vmem:[%s1 + $0x498] sm:$0xff]
      %v430 = vld [vmem:[%s1 + $0x4a0] sm:$0xff]
      %v431 = vld [vmem:[%s1 + $0x4a8] sm:$0xff]
      %v432 = vld [vmem:[%s1 + $0x4b0] sm:$0xff]
      %v433 = vld [vmem:[%s1 + $0x4b8] sm:$0xff]
      %v434 = vld [vmem:[%s1 + $0x4c0] sm:$0xff]
      %v435 = vld [vmem:[%s1 + $0x4c8] sm:$0xff]
      %v436 = vld [vmem:[%s1 + $0x4d0] sm:$0xff]
      %v437 = vld [vmem:[%s1 + $0x4d8] sm:$0xff]
      %v438 = vld [vmem:[%s1 + $0x4e0] sm:$0xff]
      %v439 = vld [vmem:[%s1 + $0x4e8] sm:$0xff]
      %v440 = vld [vmem:[%s1 + $0x4f0] sm:$0xff]
      %v441 = vld [vmem:[%s1 + $0x4f8] sm:$0xff]
      %v442 = vld [vmem:[%s1 + $0x500] sm:$0xff]
      %v443 = vld [vmem:[%s1 + $0x508] sm:$0xff]
      %v444 = vld [vmem:[%s1 + $0x510] sm:$0xff]
      %v445 = vld [vmem:[%s1 + $0x518] sm:$0xff]
      %v446 = vld [vmem:[%s1 + $0x520] sm:$0xff]
      %v447 = vld [vmem:[%s1 + $0x528] sm:$0xff]
      %v448 = vld [vmem:[%s1 + $0x530] sm:$0xff]
      %v449 = vld [vmem:[%s1 + $0x538] sm:$0xff]
      %v450 = vld [vmem:[%s1 + $0x540] sm:$0xff]
      %v451 = vld [vmem:[%s1 + $0x548] sm:$0xff]
      %v452 = vld [vmem:[%s1 + $0x550] sm:$0xff]
      %v453 = vld [vmem:[%s1 + $0x558] sm:$0xff]
      %v454 = vld [vmem:[%s1 + $0x560] sm:$0xff]
      %v455 = vld [vmem:[%s1 + $0x568] sm:$0xff]
      %v456 = vld [vmem:[%s1 + $0x570] sm:$0xff]
      %v457 = vld [vmem:[%s1 + $0x578] sm:$0xff]
      %v458 = vld [vmem:[%s1 + $0x580] sm:$0xff]
      %v459 = vld [vmem:[%s1 + $0x588] sm:$0xff]
      %v460 = vld [vmem:[%s1 + $0x590] sm:$0xff]
      %v461 = vld [vmem:[%s1 + $0x598] sm:$0xff]
      %v462 = vld [vmem:[%s1 + $0x5a0] sm:$0xff]
      %v463 = vld [vmem:[%s1 + $0x5a8] sm:$0xff]
      %v464 = vld [vmem:[%s1 + $0x5b0] sm:$0xff]
      %v465 = vld [vmem:[%s1 + $0x5b8] sm:$0xff]
      %v466 = vld [vmem:[%s1 + $0x5c0] sm:$0xff]
      %v467 = vld [vmem:[%s1 + $0x5c8] sm:$0xff]
      %v468 = vld [vmem:[%s1 + $0x5d0] sm:$0xff]
      %v469 = vld [vmem:[%s1 + $0x5d8] sm:$0xff]
      %v470 = vld [vmem:[%s1 + $0x5e0] sm:$0xff]
      %v471 = vld [vmem:[%s1 + $0x5e8] sm:$0xff]
      %v472 = vld [vmem:[%s1 + $0x5f0] sm:$0xff]
      %v473 = vld [vmem:[%s1 + $0x5f8] sm:$0xff]
      %v474 = vld [vmem:[%s1 + $0x600] sm:$0xff]
      %v475 = vld [vmem:[%s1 + $0x608] sm:$0xff]
      %v476 = vld [vmem:[%s1 + $0x610] sm:$0xff]
      %v477 = vld [vmem:[%s1 + $0x618] sm:$0xff]
      %v478 = vld [vmem:[%s1 + $0x620] sm:$0xff]
      %v479 = vld [vmem:[%s1 + $0x628] sm:$0xff]
      %v480 = vld [vmem:[%s1 + $0x630] sm:$0xff]
      %v481 = vld [vmem:[%s1 + $0x638] sm:$0xff]
      %v482 = vld [vmem:[%s1 + $0x640] sm:$0xff]
      %v483 = vld [vmem:[%s1 + $0x648] sm:$0xff]
      %v484 = vld [vmem:[%s1 + $0x650] sm:$0xff]
      %v485 = vld [vmem:[%s1 + $0x658] sm:$0xff]
      %v486 = vld [vmem:[%s1 + $0x660] sm:$0xff]
      %v487 = vld [vmem:[%s1 + $0x668] sm:$0xff]
      %v488 = vld [vmem:[%s1 + $0x670] sm:$0xff]
      %v489 = vld [vmem:[%s1 + $0x678] sm:$0xff]
      %v490 = vld [vmem:[%s1 + $0x680] sm:$0xff]
      %v491 = vld [vmem:[%s1 + $0x688] sm:$0xff]
      %v492 = vld [vmem:[%s1 + $0x690] sm:$0xff]
      %v493 = vld [vmem:[%s1 + $0x698] sm:$0xff]
      %v494 = vld [vmem:[%s1 + $0x6a0] sm:$0xff]
      %v495 = vld [vmem:[%s1 + $0x6a8] sm:$0xff]
      %v496 = vld [vmem:[%s1 + $0x6b0] sm:$0xff]
      %v497 = vld [vmem:[%s1 + $0x6b8] sm:$0xff]
      %v498 = vld [vmem:[%s1 + $0x6c0] sm:$0xff]
      %v499 = vld [vmem:[%s1 + $0x6c8] sm:$0xff]
      %v500 = vld [vmem:[%s1 + $0x6d0] sm:$0xff]
      %v501 = vld [vmem:[%s1 + $0x6d8] sm:$0xff]
      %v502 = vld [vmem:[%s1 + $0x6e0] sm:$0xff]
      %v503 = vld [vmem:[%s1 + $0x6e8] sm:$0xff]
      %v504 = vld [vmem:[%s1 + $0x6f0] sm:$0xff]
      %v505 = vld [vmem:[%s1 + $0x6f8] sm:$0xff]
      %v506 = vld [vmem:[%s1 + $0x700] sm:$0xff]
      %v507 = vld [vmem:[%s1 + $0x708] sm:$0xff]
      %v508 = vld [vmem:[%s1 + $0x710] sm:$0xff]
      %v509 = vld [vmem:[%s1 + $0x718] sm:$0xff]
      %v510 = vld [vmem:[%s1 + $0x720] sm:$0xff]
      %v511 = vld [vmem:[%s1 + $0x728] sm:$0xff]
      %v512 = vld [vmem:[%s1 + $0x730] sm:$0xff]
      %v513 = vld [vmem:[%s1 + $0x738] sm:$0xff]
      %v514 = vld [vmem:[%s1 + $0x740] sm:$0xff]
      %v515 = vld [vmem:[%s1 + $0x748] sm:$0xff]
      %v516 = vld [vmem:[%s1 + $0x750] sm:$0xff]
      %v517 = vld [vmem:[%s1 + $0x758] sm:$0xff]
      %v518 = vld [vmem:[%s1 + $0x760] sm:$0xff]
      %v519 = vld [vmem:[%s1 + $0x768] sm:$0xff]
      %v520 = vld [vmem:[%s1 + $0x770] sm:$0xff]
      %v521 = vld [vmem:[%s1 + $0x778] sm:$0xff]
      %v522 = vld [vmem:[%s270] sm:$0xff]
      %v523 = vld [vmem:[%s270 + $0x8] sm:$0xf]
      %v524 = vunpack.c.l.bf16 %v522
      %v525 = vunpack.c.h.bf16 %v522
      %v526 = vunpack.c.l.bf16 %v523
      %v529 = vcombine.high %v280, %v280
      %v531 = vunpack.c.l.s4 1983009808
      %v532 = vunpack.c.0.s8 %v531
      %v533 = vlaneseq
      %v534 = vshrl.u32 %v533, 7
      %v535 = vsub.s32 %v532, %v534
      %v536 = vrot.slane %v280, %v535
      %v538 = vunpack.c.l.s4 1983009808
      %v539 = vunpack.c.0.s8 %v538
      %v540 = vlaneseq
      %v541 = vshrl.u32 %v540, 7
      %v542 = vsub.s32 %v539, %v541
      %v543 = vrot.slane %v529, %v542
      %v544 = vcombine.high %v536, %v536
      %v545 = vcombine.high %v543, %v543
      %v547 = vunpack.c.l.s4 1983009808
      %v548 = vunpack.c.0.s8 %v547
      %v549 = vlaneseq
      %v550 = vshrl.u32 %v549, 7
      %v551 = vsub.s32 %v548, %v550
      %v552 = vrot.slane %v281, %v551
      %v798 = vunpack.c.l.b16 %v282
      %v799 = vunpack.c.h.b16 %v282
      %v800 = vunpack.c.l.b16 %v283
      %v801 = vunpack.c.h.b16 %v283
      %v802 = vunpack.c.l.b16 %v284
      %v803 = vunpack.c.h.b16 %v284
      %v804 = vunpack.c.l.b16 %v285
      %v805 = vunpack.c.h.b16 %v285
      %v806 = vunpack.c.l.b16 %v286
      %v807 = vunpack.c.h.b16 %v286
      %v808 = vunpack.c.l.b16 %v287
      %v809 = vunpack.c.h.b16 %v287
      %v810 = vunpack.c.l.b16 %v288
      %v811 = vunpack.c.h.b16 %v288
      %v812 = vunpack.c.l.b16 %v289
      %v813 = vunpack.c.h.b16 %v289
      %v814 = vunpack.c.l.b16 %v290
      %v815 = vunpack.c.h.b16 %v290
      %v816 = vunpack.c.l.b16 %v291
      %v817 = vunpack.c.h.b16 %v291
      %v818 = vunpack.c.l.b16 %v292
      %v819 = vunpack.c.h.b16 %v292
      %v820 = vunpack.c.l.b16 %v293
      %v821 = vunpack.c.h.b16 %v293
      %v822 = vunpack.c.l.b16 %v294
      %v823 = vunpack.c.h.b16 %v294
      %v824 = vunpack.c.l.b16 %v295
      %v825 = vunpack.c.h.b16 %v295
      %v826 = vunpack.c.l.b16 %v296
      %v827 = vunpack.c.h.b16 %v296
      %v828 = vunpack.c.l.b16 %v297
      %v829 = vunpack.c.h.b16 %v297
      %v830 = vunpack.c.l.b16 %v298
      %v831 = vunpack.c.h.b16 %v298
      %v832 = vunpack.c.l.b16 %v299
      %v833 = vunpack.c.h.b16 %v299
      %v834 = vunpack.c.l.b16 %v300
      %v835 = vunpack.c.h.b16 %v300
      %v836 = vunpack.c.l.b16 %v301
      %v837 = vunpack.c.h.b16 %v301
      %v838 = vunpack.c.l.b16 %v302
      %v839 = vunpack.c.h.b16 %v302
      %v840 = vunpack.c.l.b16 %v303
      %v841 = vunpack.c.h.b16 %v303
      %v842 = vunpack.c.l.b16 %v304
      %v843 = vunpack.c.h.b16 %v304
      %v844 = vunpack.c.l.b16 %v305
      %v845 = vunpack.c.h.b16 %v305
      %v846 = vunpack.c.l.b16 %v306
      %v847 = vunpack.c.h.b16 %v306
      %v848 = vunpack.c.l.b16 %v307
      %v849 = vunpack.c.h.b16 %v307
      %v850 = vunpack.c.l.b16 %v308
      %v851 = vunpack.c.h.b16 %v308
      %v852 = vunpack.c.l.b16 %v309
      %v853 = vunpack.c.h.b16 %v309
      %v854 = vunpack.c.l.b16 %v310
      %v855 = vunpack.c.h.b16 %v310
      %v856 = vunpack.c.l.b16 %v311
      %v857 = vunpack.c.h.b16 %v311
      %v858 = vunpack.c.l.b16 %v312
      %v859 = vunpack.c.h.b16 %v312
      %v860 = vunpack.c.l.b16 %v313
      %v861 = vunpack.c.h.b16 %v313
      %v862 = vunpack.c.l.b16 %v314
      %v863 = vunpack.c.h.b16 %v314
      %v864 = vunpack.c.l.b16 %v315
      %v865 = vunpack.c.h.b16 %v315
      %v866 = vunpack.c.l.b16 %v316
      %v867 = vunpack.c.h.b16 %v316
      %v868 = vunpack.c.l.b16 %v317
      %v869 = vunpack.c.h.b16 %v317
      %v870 = vunpack.c.l.b16 %v318
      %v871 = vunpack.c.h.b16 %v318
      %v872 = vunpack.c.l.b16 %v319
      %v873 = vunpack.c.h.b16 %v319
      %v874 = vunpack.c.l.b16 %v320
      %v875 = vunpack.c.h.b16 %v320
      %v876 = vunpack.c.l.b16 %v321
      %v877 = vunpack.c.h.b16 %v321
      %v878 = vunpack.c.l.b16 %v322
      %v879 = vunpack.c.h.b16 %v322
      %v880 = vunpack.c.l.b16 %v323
      %v881 = vunpack.c.h.b16 %v323
      %v882 = vunpack.c.l.b16 %v324
      %v883 = vunpack.c.h.b16 %v324
      %v884 = vunpack.c.l.b16 %v325
      %v885 = vunpack.c.h.b16 %v325
      %v886 = vunpack.c.l.b16 %v326
      %v887 = vunpack.c.h.b16 %v326
      %v888 = vunpack.c.l.b16 %v327
      %v889 = vunpack.c.h.b16 %v327
      %v890 = vunpack.c.l.b16 %v328
      %v891 = vunpack.c.h.b16 %v328
      %v892 = vunpack.c.l.b16 %v329
      %v893 = vunpack.c.h.b16 %v329
      %v894 = vunpack.c.l.b16 %v330
      %v895 = vunpack.c.h.b16 %v330
      %v896 = vunpack.c.l.b16 %v331
      %v897 = vunpack.c.h.b16 %v331
      %v898 = vunpack.c.l.b16 %v332
      %v899 = vunpack.c.h.b16 %v332
      %v900 = vunpack.c.l.b16 %v333
      %v901 = vunpack.c.h.b16 %v333
      %v902 = vunpack.c.l.b16 %v334
      %v903 = vunpack.c.h.b16 %v334
      %v904 = vunpack.c.l.b16 %v335
      %v905 = vunpack.c.h.b16 %v335
      %v906 = vunpack.c.l.b16 %v336
      %v907 = vunpack.c.h.b16 %v336
      %v908 = vunpack.c.l.b16 %v337
      %v909 = vunpack.c.h.b16 %v337
      %v910 = vunpack.c.l.b16 %v338
      %v911 = vunpack.c.h.b16 %v338
      %v912 = vunpack.c.l.b16 %v339
      %v913 = vunpack.c.h.b16 %v339
      %v914 = vunpack.c.l.b16 %v340
      %v915 = vunpack.c.h.b16 %v340
      %v916 = vunpack.c.l.b16 %v341
      %v917 = vunpack.c.h.b16 %v341
      %v918 = vunpack.c.l.b16 %v342
      %v919 = vunpack.c.h.b16 %v342
      %v920 = vunpack.c.l.b16 %v343
      %v921 = vunpack.c.h.b16 %v343
      %v922 = vunpack.c.l.b16 %v344
      %v923 = vunpack.c.h.b16 %v344
      %v924 = vunpack.c.l.b16 %v345
      %v925 = vunpack.c.h.b16 %v345
      %v926 = vunpack.c.l.b16 %v346
      %v927 = vunpack.c.h.b16 %v346
      %v928 = vunpack.c.l.b16 %v347
      %v929 = vunpack.c.h.b16 %v347
      %v930 = vunpack.c.l.b16 %v348
      %v931 = vunpack.c.h.b16 %v348
      %v932 = vunpack.c.l.b16 %v349
      %v933 = vunpack.c.h.b16 %v349
      %v934 = vunpack.c.l.b16 %v350
      %v935 = vunpack.c.h.b16 %v350
      %v936 = vunpack.c.l.b16 %v351
      %v937 = vunpack.c.h.b16 %v351
      %v938 = vunpack.c.l.b16 %v352
      %v939 = vunpack.c.h.b16 %v352
      %v940 = vunpack.c.l.b16 %v353
      %v941 = vunpack.c.h.b16 %v353
      %v942 = vunpack.c.l.b16 %v354
      %v943 = vunpack.c.h.b16 %v354
      %v944 = vunpack.c.l.b16 %v355
      %v945 = vunpack.c.h.b16 %v355
      %v946 = vunpack.c.l.b16 %v356
      %v947 = vunpack.c.h.b16 %v356
      %v948 = vunpack.c.l.b16 %v357
      %v949 = vunpack.c.h.b16 %v357
      %v950 = vunpack.c.l.b16 %v358
      %v951 = vunpack.c.h.b16 %v358
      %v952 = vunpack.c.l.b16 %v359
      %v953 = vunpack.c.h.b16 %v359
      %v954 = vunpack.c.l.b16 %v360
      %v955 = vunpack.c.h.b16 %v360
      %v956 = vunpack.c.l.b16 %v361
      %v957 = vunpack.c.h.b16 %v361
      %v958 = vunpack.c.l.b16 %v362
      %v959 = vunpack.c.h.b16 %v362
      %v960 = vunpack.c.l.b16 %v363
      %v961 = vunpack.c.h.b16 %v363
      %v962 = vunpack.c.l.b16 %v364
      %v963 = vunpack.c.h.b16 %v364
      %v964 = vunpack.c.l.b16 %v365
      %v965 = vunpack.c.h.b16 %v365
      %v966 = vunpack.c.l.b16 %v366
      %v967 = vunpack.c.h.b16 %v366
      %v968 = vunpack.c.l.b16 %v367
      %v969 = vunpack.c.h.b16 %v367
      %v970 = vunpack.c.l.b16 %v368
      %v971 = vunpack.c.h.b16 %v368
      %v972 = vunpack.c.l.b16 %v369
      %v973 = vunpack.c.h.b16 %v369
      %v974 = vunpack.c.l.b16 %v370
      %v975 = vunpack.c.h.b16 %v370
      %v976 = vunpack.c.l.b16 %v371
      %v977 = vunpack.c.h.b16 %v371
      %v978 = vunpack.c.l.b16 %v372
      %v979 = vunpack.c.h.b16 %v372
      %v980 = vunpack.c.l.b16 %v373
      %v981 = vunpack.c.h.b16 %v373
      %v982 = vunpack.c.l.b16 %v374
      %v983 = vunpack.c.h.b16 %v374
      %v984 = vunpack.c.l.b16 %v375
      %v985 = vunpack.c.h.b16 %v375
      %v986 = vunpack.c.l.b16 %v376
      %v987 = vunpack.c.h.b16 %v376
      %v988 = vunpack.c.l.b16 %v377
      %v989 = vunpack.c.h.b16 %v377
      %v990 = vunpack.c.l.b16 %v378
      %v991 = vunpack.c.h.b16 %v378
      %v992 = vunpack.c.l.b16 %v379
      %v993 = vunpack.c.h.b16 %v379
      %v994 = vunpack.c.l.b16 %v380
      %v995 = vunpack.c.h.b16 %v380
      %v996 = vunpack.c.l.b16 %v381
      %v997 = vunpack.c.h.b16 %v381
      %v998 = vunpack.c.l.b16 %v382
      %v999 = vunpack.c.h.b16 %v382
      %v1000 = vunpack.c.l.b16 %v383
      %v1001 = vunpack.c.h.b16 %v383
      %v1002 = vunpack.c.l.b16 %v384
      %v1003 = vunpack.c.h.b16 %v384
      %v1004 = vunpack.c.l.b16 %v385
      %v1005 = vunpack.c.h.b16 %v385
      %v1006 = vunpack.c.l.b16 %v386
      %v1007 = vunpack.c.h.b16 %v386
      %v1008 = vunpack.c.l.b16 %v387
      %v1009 = vunpack.c.h.b16 %v387
      %v1010 = vunpack.c.l.b16 %v388
      %v1011 = vunpack.c.h.b16 %v388
      %v1012 = vunpack.c.l.b16 %v389
      %v1013 = vunpack.c.h.b16 %v389
      %v1014 = vunpack.c.l.b16 %v390
      %v1015 = vunpack.c.h.b16 %v390
      %v1016 = vunpack.c.l.b16 %v391
      %v1017 = vunpack.c.h.b16 %v391
      %v1018 = vunpack.c.l.b16 %v392
      %v1019 = vunpack.c.h.b16 %v392
      %v1020 = vunpack.c.l.b16 %v393
      %v1021 = vunpack.c.h.b16 %v393
      %v1022 = vunpack.c.l.b16 %v394
      %v1023 = vunpack.c.h.b16 %v394
      %v1024 = vunpack.c.l.b16 %v395
      %v1025 = vunpack.c.h.b16 %v395
      %v1026 = vunpack.c.l.b16 %v396
      %v1027 = vunpack.c.h.b16 %v396
      %v1028 = vunpack.c.l.b16 %v397
      %v1029 = vunpack.c.h.b16 %v397
      %v1030 = vunpack.c.l.b16 %v398
      %v1031 = vunpack.c.h.b16 %v398
      %v1032 = vunpack.c.l.b16 %v399
      %v1033 = vunpack.c.h.b16 %v399
      %v1034 = vunpack.c.l.b16 %v400
      %v1035 = vunpack.c.h.b16 %v400
      %v1036 = vunpack.c.l.b16 %v401
      %v1037 = vunpack.c.h.b16 %v401
      %v1038 = vunpack.c.l.b16 %v402
      %v1039 = vunpack.c.h.b16 %v402
      %v1040 = vunpack.c.l.b16 %v403
      %v1041 = vunpack.c.h.b16 %v403
      %v1042 = vunpack.c.l.b16 %v404
      %v1043 = vunpack.c.h.b16 %v404
      %v1044 = vunpack.c.l.b16 %v405
      %v1045 = vunpack.c.h.b16 %v405
      %v1046 = vunpack.c.l.b16 %v406
      %v1047 = vunpack.c.h.b16 %v406
      %v1048 = vunpack.c.l.b16 %v407
      %v1049 = vunpack.c.h.b16 %v407
      %v1050 = vunpack.c.l.b16 %v408
      %v1051 = vunpack.c.h.b16 %v408
      %v1052 = vunpack.c.l.b16 %v409
      %v1053 = vunpack.c.h.b16 %v409
      %v1054 = vunpack.c.l.b16 %v410
      %v1055 = vunpack.c.h.b16 %v410
      %v1056 = vunpack.c.l.b16 %v411
      %v1057 = vunpack.c.h.b16 %v411
      %v1058 = vunpack.c.l.b16 %v412
      %v1059 = vunpack.c.h.b16 %v412
      %v1060 = vunpack.c.l.b16 %v413
      %v1061 = vunpack.c.h.b16 %v413
      %v1062 = vunpack.c.l.b16 %v414
      %v1063 = vunpack.c.h.b16 %v414
      %v1064 = vunpack.c.l.b16 %v415
      %v1065 = vunpack.c.h.b16 %v415
      %v1066 = vunpack.c.l.b16 %v416
      %v1067 = vunpack.c.h.b16 %v416
      %v1068 = vunpack.c.l.b16 %v417
      %v1069 = vunpack.c.h.b16 %v417
      %v1070 = vunpack.c.l.b16 %v418
      %v1071 = vunpack.c.h.b16 %v418
      %v1072 = vunpack.c.l.b16 %v419
      %v1073 = vunpack.c.h.b16 %v419
      %v1074 = vunpack.c.l.b16 %v420
      %v1075 = vunpack.c.h.b16 %v420
      %v1076 = vunpack.c.l.b16 %v421
      %v1077 = vunpack.c.h.b16 %v421
      %v1078 = vunpack.c.l.b16 %v422
      %v1079 = vunpack.c.h.b16 %v422
      %v1080 = vunpack.c.l.b16 %v423
      %v1081 = vunpack.c.h.b16 %v423
      %v1082 = vunpack.c.l.b16 %v424
      %v1083 = vunpack.c.h.b16 %v424
      %v1084 = vunpack.c.l.b16 %v425
      %v1085 = vunpack.c.h.b16 %v425
      %v1086 = vunpack.c.l.b16 %v426
      %v1087 = vunpack.c.h.b16 %v426
      %v1088 = vunpack.c.l.b16 %v427
      %v1089 = vunpack.c.h.b16 %v427
      %v1090 = vunpack.c.l.b16 %v428
      %v1091 = vunpack.c.h.b16 %v428
      %v1092 = vunpack.c.l.b16 %v429
      %v1093 = vunpack.c.h.b16 %v429
      %v1094 = vunpack.c.l.b16 %v430
      %v1095 = vunpack.c.h.b16 %v430
      %v1096 = vunpack.c.l.b16 %v431
      %v1097 = vunpack.c.h.b16 %v431
      %v1098 = vunpack.c.l.b16 %v432
      %v1099 = vunpack.c.h.b16 %v432
      %v1100 = vunpack.c.l.b16 %v433
      %v1101 = vunpack.c.h.b16 %v433
      %v1102 = vunpack.c.l.b16 %v434
      %v1103 = vunpack.c.h.b16 %v434
      %v1104 = vunpack.c.l.b16 %v435
      %v1105 = vunpack.c.h.b16 %v435
      %v1106 = vunpack.c.l.b16 %v436
      %v1107 = vunpack.c.h.b16 %v436
      %v1108 = vunpack.c.l.b16 %v437
      %v1109 = vunpack.c.h.b16 %v437
      %v1110 = vunpack.c.l.b16 %v438
      %v1111 = vunpack.c.h.b16 %v438
      %v1112 = vunpack.c.l.b16 %v439
      %v1113 = vunpack.c.h.b16 %v439
      %v1114 = vunpack.c.l.b16 %v440
      %v1115 = vunpack.c.h.b16 %v440
      %v1116 = vunpack.c.l.b16 %v441
      %v1117 = vunpack.c.h.b16 %v441
      %v1118 = vunpack.c.l.b16 %v442
      %v1119 = vunpack.c.h.b16 %v442
      %v1120 = vunpack.c.l.b16 %v443
      %v1121 = vunpack.c.h.b16 %v443
      %v1122 = vunpack.c.l.b16 %v444
      %v1123 = vunpack.c.h.b16 %v444
      %v1124 = vunpack.c.l.b16 %v445
      %v1125 = vunpack.c.h.b16 %v445
      %v1126 = vunpack.c.l.b16 %v446
      %v1127 = vunpack.c.h.b16 %v446
      %v1128 = vunpack.c.l.b16 %v447
      %v1129 = vunpack.c.h.b16 %v447
      %v1130 = vunpack.c.l.b16 %v448
      %v1131 = vunpack.c.h.b16 %v448
      %v1132 = vunpack.c.l.b16 %v449
      %v1133 = vunpack.c.h.b16 %v449
      %v1134 = vunpack.c.l.b16 %v450
      %v1135 = vunpack.c.h.b16 %v450
      %v1136 = vunpack.c.l.b16 %v451
      %v1137 = vunpack.c.h.b16 %v451
      %v1138 = vunpack.c.l.b16 %v452
      %v1139 = vunpack.c.h.b16 %v452
      %v1140 = vunpack.c.l.b16 %v453
      %v1141 = vunpack.c.h.b16 %v453
      %v1142 = vunpack.c.l.b16 %v454
      %v1143 = vunpack.c.h.b16 %v454
      %v1144 = vunpack.c.l.b16 %v455
      %v1145 = vunpack.c.h.b16 %v455
      %v1146 = vunpack.c.l.b16 %v456
      %v1147 = vunpack.c.h.b16 %v456
      %v1148 = vunpack.c.l.b16 %v457
      %v1149 = vunpack.c.h.b16 %v457
      %v1150 = vunpack.c.l.b16 %v458
      %v1151 = vunpack.c.h.b16 %v458
      %v1152 = vunpack.c.l.b16 %v459
      %v1153 = vunpack.c.h.b16 %v459
      %v1154 = vunpack.c.l.b16 %v460
      %v1155 = vunpack.c.h.b16 %v460
      %v1156 = vunpack.c.l.b16 %v461
      %v1157 = vunpack.c.h.b16 %v461
      %v1158 = vunpack.c.l.b16 %v462
      %v1159 = vunpack.c.h.b16 %v462
      %v1160 = vunpack.c.l.b16 %v463
      %v1161 = vunpack.c.h.b16 %v463
      %v1162 = vunpack.c.l.b16 %v464
      %v1163 = vunpack.c.h.b16 %v464
      %v1164 = vunpack.c.l.b16 %v465
      %v1165 = vunpack.c.h.b16 %v465
      %v1166 = vunpack.c.l.b16 %v466
      %v1167 = vunpack.c.h.b16 %v466
      %v1168 = vunpack.c.l.b16 %v467
      %v1169 = vunpack.c.h.b16 %v467
      %v1170 = vunpack.c.l.b16 %v468
      %v1171 = vunpack.c.h.b16 %v468
      %v1172 = vunpack.c.l.b16 %v469
      %v1173 = vunpack.c.h.b16 %v469
      %v1174 = vunpack.c.l.b16 %v470
      %v1175 = vunpack.c.h.b16 %v470
      %v1176 = vunpack.c.l.b16 %v471
      %v1177 = vunpack.c.h.b16 %v471
      %v1178 = vunpack.c.l.b16 %v472
      %v1179 = vunpack.c.h.b16 %v472
      %v1180 = vunpack.c.l.b16 %v473
      %v1181 = vunpack.c.h.b16 %v473
      %v1182 = vunpack.c.l.b16 %v474
      %v1183 = vunpack.c.h.b16 %v474
      %v1184 = vunpack.c.l.b16 %v475
      %v1185 = vunpack.c.h.b16 %v475
      %v1186 = vunpack.c.l.b16 %v476
      %v1187 = vunpack.c.h.b16 %v476
      %v1188 = vunpack.c.l.b16 %v477
      %v1189 = vunpack.c.h.b16 %v477
      %v1190 = vunpack.c.l.b16 %v478
      %v1191 = vunpack.c.h.b16 %v478
      %v1192 = vunpack.c.l.b16 %v479
      %v1193 = vunpack.c.h.b16 %v479
      %v1194 = vunpack.c.l.b16 %v480
      %v1195 = vunpack.c.h.b16 %v480
      %v1196 = vunpack.c.l.b16 %v481
      %v1197 = vunpack.c.h.b16 %v481
      %v1198 = vunpack.c.l.b16 %v482
      %v1199 = vunpack.c.h.b16 %v482
      %v1200 = vunpack.c.l.b16 %v483
      %v1201 = vunpack.c.h.b16 %v483
      %v1202 = vunpack.c.l.b16 %v484
      %v1203 = vunpack.c.h.b16 %v484
      %v1204 = vunpack.c.l.b16 %v485
      %v1205 = vunpack.c.h.b16 %v485
      %v1206 = vunpack.c.l.b16 %v486
      %v1207 = vunpack.c.h.b16 %v486
      %v1208 = vunpack.c.l.b16 %v487
      %v1209 = vunpack.c.h.b16 %v487
      %v1210 = vunpack.c.l.b16 %v488
      %v1211 = vunpack.c.h.b16 %v488
      %v1212 = vunpack.c.l.b16 %v489
      %v1213 = vunpack.c.h.b16 %v489
      %v1214 = vunpack.c.l.b16 %v490
      %v1215 = vunpack.c.h.b16 %v490
      %v1216 = vunpack.c.l.b16 %v491
      %v1217 = vunpack.c.h.b16 %v491
      %v1218 = vunpack.c.l.b16 %v492
      %v1219 = vunpack.c.h.b16 %v492
      %v1220 = vunpack.c.l.b16 %v493
      %v1221 = vunpack.c.h.b16 %v493
      %v1222 = vunpack.c.l.b16 %v494
      %v1223 = vunpack.c.h.b16 %v494
      %v1224 = vunpack.c.l.b16 %v495
      %v1225 = vunpack.c.h.b16 %v495
      %v1226 = vunpack.c.l.b16 %v496
      %v1227 = vunpack.c.h.b16 %v496
      %v1228 = vunpack.c.l.b16 %v497
      %v1229 = vunpack.c.h.b16 %v497
      %v1230 = vunpack.c.l.b16 %v498
      %v1231 = vunpack.c.h.b16 %v498
      %v1232 = vunpack.c.l.b16 %v499
      %v1233 = vunpack.c.h.b16 %v499
      %v1234 = vunpack.c.l.b16 %v500
      %v1235 = vunpack.c.h.b16 %v500
      %v1236 = vunpack.c.l.b16 %v501
      %v1237 = vunpack.c.h.b16 %v501
      %v1238 = vunpack.c.l.b16 %v502
      %v1239 = vunpack.c.h.b16 %v502
      %v1240 = vunpack.c.l.b16 %v503
      %v1241 = vunpack.c.h.b16 %v503
      %v1242 = vunpack.c.l.b16 %v504
      %v1243 = vunpack.c.h.b16 %v504
      %v1244 = vunpack.c.l.b16 %v505
      %v1245 = vunpack.c.h.b16 %v505
      %v1246 = vunpack.c.l.b16 %v506
      %v1247 = vunpack.c.h.b16 %v506
      %v1248 = vunpack.c.l.b16 %v507
      %v1249 = vunpack.c.h.b16 %v507
      %v1250 = vunpack.c.l.b16 %v508
      %v1251 = vunpack.c.h.b16 %v508
      %v1252 = vunpack.c.l.b16 %v509
      %v1253 = vunpack.c.h.b16 %v509
      %v1254 = vunpack.c.l.b16 %v510
      %v1255 = vunpack.c.h.b16 %v510
      %v1256 = vunpack.c.l.b16 %v511
      %v1257 = vunpack.c.h.b16 %v511
      %v1258 = vunpack.c.l.b16 %v512
      %v1259 = vunpack.c.h.b16 %v512
      %v1260 = vunpack.c.l.b16 %v513
      %v1261 = vunpack.c.h.b16 %v513
      %v1262 = vunpack.c.l.b16 %v514
      %v1263 = vunpack.c.h.b16 %v514
      %v1264 = vunpack.c.l.b16 %v515
      %v1265 = vunpack.c.h.b16 %v515
      %v1266 = vunpack.c.l.b16 %v516
      %v1267 = vunpack.c.h.b16 %v516
      %v1268 = vunpack.c.l.b16 %v517
      %v1269 = vunpack.c.h.b16 %v517
      %v1270 = vunpack.c.l.b16 %v518
      %v1271 = vunpack.c.h.b16 %v518
      %v1272 = vunpack.c.l.b16 %v519
      %v1273 = vunpack.c.h.b16 %v519
      %v1274 = vunpack.c.l.b16 %v520
      %v1275 = vunpack.c.h.b16 %v520
      %v1276 = vunpack.c.l.b16 %v521
      %v1277 = vunpack.c.h.b16 %v521
      %v1278 = vpack.c.b16 %v804, %v798
      %v1279 = vpack.c.b16 %v805, %v799
      %v1280 = vpack.c.b16 %v806, %v800
      %v1281 = vpack.c.b16 %v807, %v801
      %v1282 = vpack.c.b16 %v808, %v802
      %v1283 = vpack.c.b16 %v809, %v803
      %v1284 = vpack.c.b16 %v816, %v810
      %v1285 = vpack.c.b16 %v817, %v811
      %v1286 = vpack.c.b16 %v818, %v812
      %v1287 = vpack.c.b16 %v819, %v813
      %v1288 = vpack.c.b16 %v820, %v814
      %v1289 = vpack.c.b16 %v821, %v815
      %v1290 = vpack.c.b16 %v828, %v822
      %v1291 = vpack.c.b16 %v829, %v823
      %v1292 = vpack.c.b16 %v830, %v824
      %v1293 = vpack.c.b16 %v831, %v825
      %v1294 = vpack.c.b16 %v832, %v826
      %v1295 = vpack.c.b16 %v833, %v827
      %v1296 = vpack.c.b16 %v840, %v834
      %v1297 = vpack.c.b16 %v841, %v835
      %v1298 = vpack.c.b16 %v842, %v836
      %v1299 = vpack.c.b16 %v843, %v837
      %v1300 = vpack.c.b16 %v844, %v838
      %v1301 = vpack.c.b16 %v845, %v839
      %v1302 = vpack.c.b16 %v852, %v846
      %v1303 = vpack.c.b16 %v853, %v847
      %v1304 = vpack.c.b16 %v854, %v848
      %v1305 = vpack.c.b16 %v855, %v849
      %v1306 = vpack.c.b16 %v856, %v850
      %v1307 = vpack.c.b16 %v857, %v851
      %v1308 = vpack.c.b16 %v864, %v858
      %v1309 = vpack.c.b16 %v865, %v859
      %v1310 = vpack.c.b16 %v866, %v860
      %v1311 = vpack.c.b16 %v867, %v861
      %v1312 = vpack.c.b16 %v868, %v862
      %v1313 = vpack.c.b16 %v869, %v863
      %v1314 = vpack.c.b16 %v876, %v870
      %v1315 = vpack.c.b16 %v877, %v871
      %v1316 = vpack.c.b16 %v878, %v872
      %v1317 = vpack.c.b16 %v879, %v873
      %v1318 = vpack.c.b16 %v880, %v874
      %v1319 = vpack.c.b16 %v881, %v875
      %v1320 = vpack.c.b16 %v888, %v882
      %v1321 = vpack.c.b16 %v889, %v883
      %v1322 = vpack.c.b16 %v890, %v884
      %v1323 = vpack.c.b16 %v891, %v885
      %v1324 = vpack.c.b16 %v892, %v886
      %v1325 = vpack.c.b16 %v893, %v887
      %v1326 = vpack.c.b16 %v900, %v894
      %v1327 = vpack.c.b16 %v901, %v895
      %v1328 = vpack.c.b16 %v902, %v896
      %v1329 = vpack.c.b16 %v903, %v897
      %v1330 = vpack.c.b16 %v904, %v898
      %v1331 = vpack.c.b16 %v905, %v899
      %v1332 = vpack.c.b16 %v912, %v906
      %v1333 = vpack.c.b16 %v913, %v907
      %v1334 = vpack.c.b16 %v914, %v908
      %v1335 = vpack.c.b16 %v915, %v909
      %v1336 = vpack.c.b16 %v916, %v910
      %v1337 = vpack.c.b16 %v917, %v911
      %v1338 = vpack.c.b16 %v924, %v918
      %v1339 = vpack.c.b16 %v925, %v919
      %v1340 = vpack.c.b16 %v926, %v920
      %v1341 = vpack.c.b16 %v927, %v921
      %v1342 = vpack.c.b16 %v928, %v922
      %v1343 = vpack.c.b16 %v929, %v923
      %v1344 = vpack.c.b16 %v936, %v930
      %v1345 = vpack.c.b16 %v937, %v931
      %v1346 = vpack.c.b16 %v938, %v932
      %v1347 = vpack.c.b16 %v939, %v933
      %v1348 = vpack.c.b16 %v940, %v934
      %v1349 = vpack.c.b16 %v941, %v935
      %v1350 = vpack.c.b16 %v948, %v942
      %v1351 = vpack.c.b16 %v949, %v943
      %v1352 = vpack.c.b16 %v950, %v944
      %v1353 = vpack.c.b16 %v951, %v945
      %v1354 = vpack.c.b16 %v952, %v946
      %v1355 = vpack.c.b16 %v953, %v947
      %v1356 = vpack.c.b16 %v960, %v954
      %v1357 = vpack.c.b16 %v961, %v955
      %v1358 = vpack.c.b16 %v962, %v956
      %v1359 = vpack.c.b16 %v963, %v957
      %v1360 = vpack.c.b16 %v964, %v958
      %v1361 = vpack.c.b16 %v965, %v959
      %v1362 = vpack.c.b16 %v972, %v966
      %v1363 = vpack.c.b16 %v973, %v967
      %v1364 = vpack.c.b16 %v974, %v968
      %v1365 = vpack.c.b16 %v975, %v969
      %v1366 = vpack.c.b16 %v976, %v970
      %v1367 = vpack.c.b16 %v977, %v971
      %v1368 = vpack.c.b16 %v984, %v978
      %v1369 = vpack.c.b16 %v985, %v979
      %v1370 = vpack.c.b16 %v986, %v980
      %v1371 = vpack.c.b16 %v987, %v981
      %v1372 = vpack.c.b16 %v988, %v982
      %v1373 = vpack.c.b16 %v989, %v983
      %v1374 = vpack.c.b16 %v996, %v990
      %v1375 = vpack.c.b16 %v997, %v991
      %v1376 = vpack.c.b16 %v998, %v992
      %v1377 = vpack.c.b16 %v999, %v993
      %v1378 = vpack.c.b16 %v1000, %v994
      %v1379 = vpack.c.b16 %v1001, %v995
      %v1380 = vpack.c.b16 %v1008, %v1002
      %v1381 = vpack.c.b16 %v1009, %v1003
      %v1382 = vpack.c.b16 %v1010, %v1004
      %v1383 = vpack.c.b16 %v1011, %v1005
      %v1384 = vpack.c.b16 %v1012, %v1006
      %v1385 = vpack.c.b16 %v1013, %v1007
      %v1386 = vpack.c.b16 %v1020, %v1014
      %v1387 = vpack.c.b16 %v1021, %v1015
      %v1388 = vpack.c.b16 %v1022, %v1016
      %v1389 = vpack.c.b16 %v1023, %v1017
      %v1390 = vpack.c.b16 %v1024, %v1018
      %v1391 = vpack.c.b16 %v1025, %v1019
      %v1392 = vpack.c.b16 %v1032, %v1026
      %v1393 = vpack.c.b16 %v1033, %v1027
      %v1394 = vpack.c.b16 %v1034, %v1028
      %v1395 = vpack.c.b16 %v1035, %v1029
      %v1396 = vpack.c.b16 %v1036, %v1030
      %v1397 = vpack.c.b16 %v1037, %v1031
      %v1398 = vpack.c.b16 %v1044, %v1038
      %v1399 = vpack.c.b16 %v1045, %v1039
      %v1400 = vpack.c.b16 %v1046, %v1040
      %v1401 = vpack.c.b16 %v1047, %v1041
      %v1402 = vpack.c.b16 %v1048, %v1042
      %v1403 = vpack.c.b16 %v1049, %v1043
      %v1404 = vpack.c.b16 %v1056, %v1050
      %v1405 = vpack.c.b16 %v1057, %v1051
      %v1406 = vpack.c.b16 %v1058, %v1052
      %v1407 = vpack.c.b16 %v1059, %v1053
      %v1408 = vpack.c.b16 %v1060, %v1054
      %v1409 = vpack.c.b16 %v1061, %v1055
      %v1410 = vpack.c.b16 %v1068, %v1062
      %v1411 = vpack.c.b16 %v1069, %v1063
      %v1412 = vpack.c.b16 %v1070, %v1064
      %v1413 = vpack.c.b16 %v1071, %v1065
      %v1414 = vpack.c.b16 %v1072, %v1066
      %v1415 = vpack.c.b16 %v1073, %v1067
      %v1416 = vpack.c.b16 %v1080, %v1074
      %v1417 = vpack.c.b16 %v1081, %v1075
      %v1418 = vpack.c.b16 %v1082, %v1076
      %v1419 = vpack.c.b16 %v1083, %v1077
      %v1420 = vpack.c.b16 %v1084, %v1078
      %v1421 = vpack.c.b16 %v1085, %v1079
      %v1422 = vpack.c.b16 %v1092, %v1086
      %v1423 = vpack.c.b16 %v1093, %v1087
      %v1424 = vpack.c.b16 %v1094, %v1088
      %v1425 = vpack.c.b16 %v1095, %v1089
      %v1426 = vpack.c.b16 %v1096, %v1090
      %v1427 = vpack.c.b16 %v1097, %v1091
      %v1428 = vpack.c.b16 %v1104, %v1098
      %v1429 = vpack.c.b16 %v1105, %v1099
      %v1430 = vpack.c.b16 %v1106, %v1100
      %v1431 = vpack.c.b16 %v1107, %v1101
      %v1432 = vpack.c.b16 %v1108, %v1102
      %v1433 = vpack.c.b16 %v1109, %v1103
      %v1434 = vpack.c.b16 %v1116, %v1110
      %v1435 = vpack.c.b16 %v1117, %v1111
      %v1436 = vpack.c.b16 %v1118, %v1112
      %v1437 = vpack.c.b16 %v1119, %v1113
      %v1438 = vpack.c.b16 %v1120, %v1114
      %v1439 = vpack.c.b16 %v1121, %v1115
      %v1440 = vpack.c.b16 %v1128, %v1122
      %v1441 = vpack.c.b16 %v1129, %v1123
      %v1442 = vpack.c.b16 %v1130, %v1124
      %v1443 = vpack.c.b16 %v1131, %v1125
      %v1444 = vpack.c.b16 %v1132, %v1126
      %v1445 = vpack.c.b16 %v1133, %v1127
      %v1446 = vpack.c.b16 %v1140, %v1134
      %v1447 = vpack.c.b16 %v1141, %v1135
      %v1448 = vpack.c.b16 %v1142, %v1136
      %v1449 = vpack.c.b16 %v1143, %v1137
      %v1450 = vpack.c.b16 %v1144, %v1138
      %v1451 = vpack.c.b16 %v1145, %v1139
      %v1452 = vpack.c.b16 %v1152, %v1146
      %v1453 = vpack.c.b16 %v1153, %v1147
      %v1454 = vpack.c.b16 %v1154, %v1148
      %v1455 = vpack.c.b16 %v1155, %v1149
      %v1456 = vpack.c.b16 %v1156, %v1150
      %v1457 = vpack.c.b16 %v1157, %v1151
      %v1458 = vpack.c.b16 %v1164, %v1158
      %v1459 = vpack.c.b16 %v1165, %v1159
      %v1460 = vpack.c.b16 %v1166, %v1160
      %v1461 = vpack.c.b16 %v1167, %v1161
      %v1462 = vpack.c.b16 %v1168, %v1162
      %v1463 = vpack.c.b16 %v1169, %v1163
      %v1464 = vpack.c.b16 %v1176, %v1170
      %v1465 = vpack.c.b16 %v1177, %v1171
      %v1466 = vpack.c.b16 %v1178, %v1172
      %v1467 = vpack.c.b16 %v1179, %v1173
      %v1468 = vpack.c.b16 %v1180, %v1174
      %v1469 = vpack.c.b16 %v1181, %v1175
      %v1470 = vpack.c.b16 %v1188, %v1182
      %v1471 = vpack.c.b16 %v1189, %v1183
      %v1472 = vpack.c.b16 %v1190, %v1184
      %v1473 = vpack.c.b16 %v1191, %v1185
      %v1474 = vpack.c.b16 %v1192, %v1186
      %v1475 = vpack.c.b16 %v1193, %v1187
      %v1476 = vpack.c.b16 %v1200, %v1194
      %v1477 = vpack.c.b16 %v1201, %v1195
      %v1478 = vpack.c.b16 %v1202, %v1196
      %v1479 = vpack.c.b16 %v1203, %v1197
      %v1480 = vpack.c.b16 %v1204, %v1198
      %v1481 = vpack.c.b16 %v1205, %v1199
      %v1482 = vpack.c.b16 %v1212, %v1206
      %v1483 = vpack.c.b16 %v1213, %v1207
      %v1484 = vpack.c.b16 %v1214, %v1208
      %v1485 = vpack.c.b16 %v1215, %v1209
      %v1486 = vpack.c.b16 %v1216, %v1210
      %v1487 = vpack.c.b16 %v1217, %v1211
      %v1488 = vpack.c.b16 %v1224, %v1218
      %v1489 = vpack.c.b16 %v1225, %v1219
      %v1490 = vpack.c.b16 %v1226, %v1220
      %v1491 = vpack.c.b16 %v1227, %v1221
      %v1492 = vpack.c.b16 %v1228, %v1222
      %v1493 = vpack.c.b16 %v1229, %v1223
      %v1494 = vpack.c.b16 %v1236, %v1230
      %v1495 = vpack.c.b16 %v1237, %v1231
      %v1496 = vpack.c.b16 %v1238, %v1232
      %v1497 = vpack.c.b16 %v1239, %v1233
      %v1498 = vpack.c.b16 %v1240, %v1234
      %v1499 = vpack.c.b16 %v1241, %v1235
      %v1500 = vpack.c.b16 %v1248, %v1242
      %v1501 = vpack.c.b16 %v1249, %v1243
      %v1502 = vpack.c.b16 %v1250, %v1244
      %v1503 = vpack.c.b16 %v1251, %v1245
      %v1504 = vpack.c.b16 %v1252, %v1246
      %v1505 = vpack.c.b16 %v1253, %v1247
      %v1506 = vpack.c.b16 %v1260, %v1254
      %v1507 = vpack.c.b16 %v1261, %v1255
      %v1508 = vpack.c.b16 %v1262, %v1256
      %v1509 = vpack.c.b16 %v1263, %v1257
      %v1510 = vpack.c.b16 %v1264, %v1258
      %v1511 = vpack.c.b16 %v1265, %v1259
      %v1512 = vpack.c.b16 %v1272, %v1266
      %v1513 = vpack.c.b16 %v1273, %v1267
      %v1514 = vpack.c.b16 %v1274, %v1268
      %v1515 = vpack.c.b16 %v1275, %v1269
      %v1516 = vpack.c.b16 %v1276, %v1270
      %v1517 = vpack.c.b16 %v1277, %v1271
      %v1761 = vcombine.high %v524, %v524
      %v1762 = vcombine.high %v525, %v525
      %v1763 = vcombine.high %v526, %v526
      %1767 = vmatprep.subr.bf16.mxu0 %v1279
      %1768 = vmatpush1.bf16.msra.mxu0 %v1278
      %1769 = vmatprep.subr.bf16.mxu0 %v1285
      %1770 = vmatpush1.bf16.msra.mxu0 %v1284
      %1771 = vmatprep.subr.bf16.mxu0 %v1291
      %1772 = vmatpush1.bf16.msra.mxu0 %v1290
      %1773 = vmatprep.subr.bf16.mxu0 %v1297
      %1774 = vmatpush1.bf16.msra.mxu0 %v1296
      %1775 = vmatprep.subr.bf16.mxu0 %v1303
      %1776 = vmatpush1.bf16.msra.mxu0 %v1302
      %1777 = vmatprep.subr.bf16.mxu0 %v1309
      %1778 = vmatpush1.bf16.msra.mxu0 %v1308
      %1779 = vmatprep.subr.bf16.mxu0 %v1315
      %1780 = vmatpush1.bf16.msra.mxu0 %v1314
      %1781 = vmatprep.subr.bf16.mxu0 %v1321
      %1782 = vmatpush1.bf16.msra.mxu0 %v1320
      %1783 = vmatprep.subr.bf16.mxu0 %v1327
      %1784 = vmatpush1.bf16.msra.mxu0 %v1326
      %1785 = vmatprep.subr.bf16.mxu0 %v1333
      %1786 = vmatpush1.bf16.msra.mxu0 %v1332
      %1787 = vmatprep.subr.bf16.mxu0 %v1339
      %1788 = vmatpush1.bf16.msra.mxu0 %v1338
      %1789 = vmatprep.subr.bf16.mxu0 %v1345
      %1790 = vmatpush1.bf16.msra.mxu0 %v1344
      %1791 = vmatprep.subr.bf16.mxu0 %v1351
      %1792 = vmatpush1.bf16.msra.mxu0 %v1350
      %1793 = vmatprep.subr.bf16.mxu0 %v1357
      %1794 = vmatpush1.bf16.msra.mxu0 %v1356
      %1795 = vmatprep.subr.bf16.mxu0 %v1363
      %1796 = vmatpush1.bf16.msra.mxu0 %v1362
      %1797 = vmatprep.subr.bf16.mxu0 %v1369
      %1798 = vmatpush1.bf16.msra.mxu0 %v1368
      %1799 = vmatprep.mubr.bf16.mxu0 %v544
      %1800 = vmatmul.mubr.bf16.gmra.mrb[0].mxu0 %v536
      %v1801 = vpop.f32.mrb[0].mxu0
      %v1802 = vadd.f32 %v524, %v1801
      %v1803 = vpop.f32.mrb[0].mxu0
      %v1804 = vadd.f32 %v1761, %v1803
      %v1805 = vpop.f32.mrb[0].mxu0
      %v1806 = vpop.f32.mrb[0].mxu0
      %1807 = vdwg.mxu0
      %1808 = vmatprep.subr.bf16.mxu0 %v1375
      %1809 = vmatpush1.bf16.msra.mxu0 %v1374
      %1810 = vmatprep.subr.bf16.mxu0 %v1381
      %1811 = vmatpush1.bf16.msra.mxu0 %v1380
      %1812 = vmatprep.subr.bf16.mxu0 %v1387
      %1813 = vmatpush1.bf16.msra.mxu0 %v1386
      %1814 = vmatprep.subr.bf16.mxu0 %v1393
      %1815 = vmatpush1.bf16.msra.mxu0 %v1392
      %1816 = vmatprep.subr.bf16.mxu0 %v1399
      %1817 = vmatpush1.bf16.msra.mxu0 %v1398
      %1818 = vmatprep.subr.bf16.mxu0 %v1405
      %1819 = vmatpush1.bf16.msra.mxu0 %v1404
      %1820 = vmatprep.subr.bf16.mxu0 %v1411
      %1821 = vmatpush1.bf16.msra.mxu0 %v1410
      %1822 = vmatprep.subr.bf16.mxu0 %v1417
      %1823 = vmatpush1.bf16.msra.mxu0 %v1416
      %1824 = vmatprep.subr.bf16.mxu0 %v1423
      %1825 = vmatpush1.bf16.msra.mxu0 %v1422
      %1826 = vmatprep.subr.bf16.mxu0 %v1429
      %1827 = vmatpush1.bf16.msra.mxu0 %v1428
      %1828 = vmatprep.subr.bf16.mxu0 %v1435
      %1829 = vmatpush1.bf16.msra.mxu0 %v1434
      %1830 = vmatprep.subr.bf16.mxu0 %v1441
      %1831 = vmatpush1.bf16.msra.mxu0 %v1440
      %1832 = vmatprep.subr.bf16.mxu0 %v1447
      %1833 = vmatpush1.bf16.msra.mxu0 %v1446
      %1834 = vmatprep.subr.bf16.mxu0 %v1453
      %1835 = vmatpush1.bf16.msra.mxu0 %v1452
      %1836 = vmatprep.subr.bf16.mxu0 %v1459
      %1837 = vmatpush1.bf16.msra.mxu0 %v1458
      %1838 = vmatprep.subr.bf16.mxu0 %v1465
      %1839 = vmatpush1.bf16.msra.mxu0 %v1464
      %1840 = vmatprep.mubr.bf16.mxu0 %v545
      %1841 = vmatmul.mubr.bf16.gmra.mrb[0].mxu0 %v543
      %v1842 = vpop.f32.mrb[0].mxu0
      %v1843 = vadd.f32 %v1802, %v1842
      %v1844 = vpop.f32.mrb[0].mxu0
      %v1845 = vadd.f32 %v1804, %v1844
      %v1846 = vpop.f32.mrb[0].mxu0
      %v1847 = vpop.f32.mrb[0].mxu0
      %1848 = vdwg.mxu0
      %1849 = vmatprep.subr.bf16.mxu0 %v1471
      %1850 = vmatpush1.bf16.msra.mxu0 %v1470
      %1851 = vmatprep.subr.bf16.mxu0 %v1477
      %1852 = vmatpush1.bf16.msra.mxu0 %v1476
      %1853 = vmatprep.subr.bf16.mxu0 %v1483
      %1854 = vmatpush1.bf16.msra.mxu0 %v1482
      %1855 = vmatprep.subr.bf16.mxu0 %v1489
      %1856 = vmatpush1.bf16.msra.mxu0 %v1488
      %1857 = vmatprep.subr.bf16.mxu0 %v1495
      %1858 = vmatpush1.bf16.msra.mxu0 %v1494
      %1859 = vmatprep.subr.bf16.mxu0 %v1501
      %1860 = vmatpush1.bf16.msra.mxu0 %v1500
      %1861 = vmatprep.subr.bf16.mxu0 %v1507
      %1862 = vmatpush1.bf16.msra.mxu0 %v1506
      %1863 = vmatprep.subr.bf16.mxu0 %v1513
      %1864 = vmatpush1.bf16.msra.mxu0 %v1512
      %1865 = vmatprep.subr.bf16.mxu0 0
      %1866 = vmatpush1.bf16.msra.mxu0 0
      %1867 = vmatprep.subr.bf16.mxu0 0
      %1868 = vmatpush1.bf16.msra.mxu0 0
      %1869 = vmatprep.subr.bf16.mxu0 0
      %1870 = vmatpush1.bf16.msra.mxu0 0
      %1871 = vmatprep.subr.bf16.mxu0 0
      %1872 = vmatpush1.bf16.msra.mxu0 0
      %1873 = vmatprep.subr.bf16.mxu0 0
      %1874 = vmatpush1.bf16.msra.mxu0 0
      %1875 = vmatprep.subr.bf16.mxu0 0
      %1876 = vmatpush1.bf16.msra.mxu0 0
      %1877 = vmatprep.subr.bf16.mxu0 0
      %1878 = vmatpush1.bf16.msra.mxu0 0
      %1879 = vmatprep.subr.bf16.mxu0 0
      %1880 = vmatpush1.bf16.msra.mxu0 0
      %1881 = vmatprep.mubr.bf16.mxu0 0
      %1882 = vmatmul.mubr.bf16.gmra.mrb[0].mxu0 %v552
      %v1883 = vpop.f32.mrb[0].mxu0
      %v1884 = vadd.f32 %v1843, %v1883
      %v1885 = vpop.f32.mrb[0].mxu0
      %v1886 = vadd.f32 %v1845, %v1885
      %v1887 = vpop.f32.mrb[0].mxu0
      %v1888 = vpop.f32.mrb[0].mxu0
      %1889 = vdwg.mxu0
      %1890 = vmatprep.subr.bf16.mxu0 %v1281
      %1891 = vmatpush1.bf16.msra.mxu0 %v1280
      %1892 = vmatprep.subr.bf16.mxu0 %v1287
      %1893 = vmatpush1.bf16.msra.mxu0 %v1286
      %1894 = vmatprep.subr.bf16.mxu0 %v1293
      %1895 = vmatpush1.bf16.msra.mxu0 %v1292
      %1896 = vmatprep.subr.bf16.mxu0 %v1299
      %1897 = vmatpush1.bf16.msra.mxu0 %v1298
      %1898 = vmatprep.subr.bf16.mxu0 %v1305
      %1899 = vmatpush1.bf16.msra.mxu0 %v1304
      %1900 = vmatprep.subr.bf16.mxu0 %v1311
      %1901 = vmatpush1.bf16.msra.mxu0 %v1310
      %1902 = vmatprep.subr.bf16.mxu0 %v1317
      %1903 = vmatpush1.bf16.msra.mxu0 %v1316
      %1904 = vmatprep.subr.bf16.mxu0 %v1323
      %1905 = vmatpush1.bf16.msra.mxu0 %v1322
      %1906 = vmatprep.subr.bf16.mxu0 %v1329
      %1907 = vmatpush1.bf16.msra.mxu0 %v1328
      %1908 = vmatprep.subr.bf16.mxu0 %v1335
      %1909 = vmatpush1.bf16.msra.mxu0 %v1334
      %1910 = vmatprep.subr.bf16.mxu0 %v1341
      %1911 = vmatpush1.bf16.msra.mxu0 %v1340
      %1912 = vmatprep.subr.bf16.mxu0 %v1347
      %1913 = vmatpush1.bf16.msra.mxu0 %v1346
      %1914 = vmatprep.subr.bf16.mxu0 %v1353
      %1915 = vmatpush1.bf16.msra.mxu0 %v1352
      %1916 = vmatprep.subr.bf16.mxu0 %v1359
      %1917 = vmatpush1.bf16.msra.mxu0 %v1358
      %1918 = vmatprep.subr.bf16.mxu0 %v1365
      %1919 = vmatpush1.bf16.msra.mxu0 %v1364
      %1920 = vmatprep.subr.bf16.mxu0 %v1371
      %1921 = vmatpush1.bf16.msra.mxu0 %v1370
      %1922 = vmatprep.mubr.bf16.mxu0 %v544
      %1923 = vmatmul.mubr.bf16.gmra.mrb[0].mxu0 %v536
      %v1924 = vpop.f32.mrb[0].mxu0
      %v1925 = vadd.f32 %v525, %v1924
      %v1926 = vpop.f32.mrb[0].mxu0
      %v1927 = vadd.f32 %v1762, %v1926
      %v1928 = vpop.f32.mrb[0].mxu0
      %v1929 = vpop.f32.mrb[0].mxu0
      %1930 = vdwg.mxu0
      %1931 = vmatprep.subr.bf16.mxu0 %v1377
      %1932 = vmatpush1.bf16.msra.mxu0 %v1376
      %1933 = vmatprep.subr.bf16.mxu0 %v1383
      %1934 = vmatpush1.bf16.msra.mxu0 %v1382
      %1935 = vmatprep.subr.bf16.mxu0 %v1389
      %1936 = vmatpush1.bf16.msra.mxu0 %v1388
      %1937 = vmatprep.subr.bf16.mxu0 %v1395
      %1938 = vmatpush1.bf16.msra.mxu0 %v1394
      %1939 = vmatprep.subr.bf16.mxu0 %v1401
      %1940 = vmatpush1.bf16.msra.mxu0 %v1400
      %1941 = vmatprep.subr.bf16.mxu0 %v1407
      %1942 = vmatpush1.bf16.msra.mxu0 %v1406
      %1943 = vmatprep.subr.bf16.mxu0 %v1413
      %1944 = vmatpush1.bf16.msra.mxu0 %v1412
      %1945 = vmatprep.subr.bf16.mxu0 %v1419
      %1946 = vmatpush1.bf16.msra.mxu0 %v1418
      %1947 = vmatprep.subr.bf16.mxu0 %v1425
      %1948 = vmatpush1.bf16.msra.mxu0 %v1424
      %1949 = vmatprep.subr.bf16.mxu0 %v1431
      %1950 = vmatpush1.bf16.msra.mxu0 %v1430
      %1951 = vmatprep.subr.bf16.mxu0 %v1437
      %1952 = vmatpush1.bf16.msra.mxu0 %v1436
      %1953 = vmatprep.subr.bf16.mxu0 %v1443
      %1954 = vmatpush1.bf16.msra.mxu0 %v1442
      %1955 = vmatprep.subr.bf16.mxu0 %v1449
      %1956 = vmatpush1.bf16.msra.mxu0 %v1448
      %1957 = vmatprep.subr.bf16.mxu0 %v1455
      %1958 = vmatpush1.bf16.msra.mxu0 %v1454
      %1959 = vmatprep.subr.bf16.mxu0 %v1461
      %1960 = vmatpush1.bf16.msra.mxu0 %v1460
      %1961 = vmatprep.subr.bf16.mxu0 %v1467
      %1962 = vmatpush1.bf16.msra.mxu0 %v1466
      %1963 = vmatprep.mubr.bf16.mxu0 %v545
      %1964 = vmatmul.mubr.bf16.gmra.mrb[0].mxu0 %v543
      %v1965 = vpop.f32.mrb[0].mxu0
      %v1966 = vadd.f32 %v1925, %v1965
      %v1967 = vpop.f32.mrb[0].mxu0
      %v1968 = vadd.f32 %v1927, %v1967
      %v1969 = vpop.f32.mrb[0].mxu0
      %v1970 = vpop.f32.mrb[0].mxu0
      %1971 = vdwg.mxu0
      %1972 = vmatprep.subr.bf16.mxu0 %v1473
      %1973 = vmatpush1.bf16.msra.mxu0 %v1472
      %1974 = vmatprep.subr.bf16.mxu0 %v1479
      %1975 = vmatpush1.bf16.msra.mxu0 %v1478
      %1976 = vmatprep.subr.bf16.mxu0 %v1485
      %1977 = vmatpush1.bf16.msra.mxu0 %v1484
      %1978 = vmatprep.subr.bf16.mxu0 %v1491
      %1979 = vmatpush1.bf16.msra.mxu0 %v1490
      %1980 = vmatprep.subr.bf16.mxu0 %v1497
      %1981 = vmatpush1.bf16.msra.mxu0 %v1496
      %1982 = vmatprep.subr.bf16.mxu0 %v1503
      %1983 = vmatpush1.bf16.msra.mxu0 %v1502
      %1984 = vmatprep.subr.bf16.mxu0 %v1509
      %1985 = vmatpush1.bf16.msra.mxu0 %v1508
      %1986 = vmatprep.subr.bf16.mxu0 %v1515
      %1987 = vmatpush1.bf16.msra.mxu0 %v1514
      %1988 = vmatprep.subr.bf16.mxu0 0
      %1989 = vmatpush1.bf16.msra.mxu0 0
      %1990 = vmatprep.subr.bf16.mxu0 0
      %1991 = vmatpush1.bf16.msra.mxu0 0
      %1992 = vmatprep.subr.bf16.mxu0 0
      %1993 = vmatpush1.bf16.msra.mxu0 0
      %1994 = vmatprep.subr.bf16.mxu0 0
      %1995 = vmatpush1.bf16.msra.mxu0 0
      %1996 = vmatprep.subr.bf16.mxu0 0
      %1997 = vmatpush1.bf16.msra.mxu0 0
      %1998 = vmatprep.subr.bf16.mxu0 0
      %1999 = vmatpush1.bf16.msra.mxu0 0
      %2000 = vmatprep.subr.bf16.mxu0 0
      %2001 = vmatpush1.bf16.msra.mxu0 0
      %2002 = vmatprep.subr.bf16.mxu0 0
      %2003 = vmatpush1.bf16.msra.mxu0 0
      %2004 = vmatprep.mubr.bf16.mxu0 0
      %2005 = vmatmul.mubr.bf16.gmra.mrb[0].mxu0 %v552
      %v2006 = vpop.f32.mrb[0].mxu0
      %v2007 = vadd.f32 %v1966, %v2006
      %v2008 = vpop.f32.mrb[0].mxu0
      %v2009 = vadd.f32 %v1968, %v2008
      %v2010 = vpop.f32.mrb[0].mxu0
      %v2011 = vpop.f32.mrb[0].mxu0
      %2012 = vdwg.mxu0
      %2013 = vmatprep.subr.bf16.mxu0 %v1283
      %2014 = vmatpush1.bf16.msra.mxu0 %v1282
      %2015 = vmatprep.subr.bf16.mxu0 %v1289
      %2016 = vmatpush1.bf16.msra.mxu0 %v1288
      %2017 = vmatprep.subr.bf16.mxu0 %v1295
      %2018 = vmatpush1.bf16.msra.mxu0 %v1294
      %2019 = vmatprep.subr.bf16.mxu0 %v1301
      %2020 = vmatpush1.bf16.msra.mxu0 %v1300
      %2021 = vmatprep.subr.bf16.mxu0 %v1307
      %2022 = vmatpush1.bf16.msra.mxu0 %v1306
      %2023 = vmatprep.subr.bf16.mxu0 %v1313
      %2024 = vmatpush1.bf16.msra.mxu0 %v1312
      %2025 = vmatprep.subr.bf16.mxu0 %v1319
      %2026 = vmatpush1.bf16.msra.mxu0 %v1318
      %2027 = vmatprep.subr.bf16.mxu0 %v1325
      %2028 = vmatpush1.bf16.msra.mxu0 %v1324
      %2029 = vmatprep.subr.bf16.mxu0 %v1331
      %2030 = vmatpush1.bf16.msra.mxu0 %v1330
      %2031 = vmatprep.subr.bf16.mxu0 %v1337
      %2032 = vmatpush1.bf16.msra.mxu0 %v1336
      %2033 = vmatprep.subr.bf16.mxu0 %v1343
      %2034 = vmatpush1.bf16.msra.mxu0 %v1342
      %2035 = vmatprep.subr.bf16.mxu0 %v1349
      %2036 = vmatpush1.bf16.msra.mxu0 %v1348
      %2037 = vmatprep.subr.bf16.mxu0 %v1355
      %2038 = vmatpush1.bf16.msra.mxu0 %v1354
      %2039 = vmatprep.subr.bf16.mxu0 %v1361
      %2040 = vmatpush1.bf16.msra.mxu0 %v1360
      %2041 = vmatprep.subr.bf16.mxu0 %v1367
      %2042 = vmatpush1.bf16.msra.mxu0 %v1366
      %2043 = vmatprep.subr.bf16.mxu0 %v1373
      %2044 = vmatpush1.bf16.msra.mxu0 %v1372
      %2045 = vmatprep.mubr.bf16.mxu0 %v544
      %2046 = vmatmul.mubr.bf16.gmra.mrb[0].mxu0 %v536
      %v2047 = vpop.f32.mrb[0].mxu0
      %v2048 = vadd.f32 %v526, %v2047
      %v2049 = vpop.f32.mrb[0].mxu0
      %v2050 = vadd.f32 %v1763, %v2049
      %v2051 = vpop.f32.mrb[0].mxu0
      %v2052 = vpop.f32.mrb[0].mxu0
      %2053 = vdwg.mxu0
      %2054 = vmatprep.subr.bf16.mxu0 %v1379
      %2055 = vmatpush1.bf16.msra.mxu0 %v1378
      %2056 = vmatprep.subr.bf16.mxu0 %v1385
      %2057 = vmatpush1.bf16.msra.mxu0 %v1384
      %2058 = vmatprep.subr.bf16.mxu0 %v1391
      %2059 = vmatpush1.bf16.msra.mxu0 %v1390
      %2060 = vmatprep.subr.bf16.mxu0 %v1397
      %2061 = vmatpush1.bf16.msra.mxu0 %v1396
      %2062 = vmatprep.subr.bf16.mxu0 %v1403
      %2063 = vmatpush1.bf16.msra.mxu0 %v1402
      %2064 = vmatprep.subr.bf16.mxu0 %v1409
      %2065 = vmatpush1.bf16.msra.mxu0 %v1408
      %2066 = vmatprep.subr.bf16.mxu0 %v1415
      %2067 = vmatpush1.bf16.msra.mxu0 %v1414
      %2068 = vmatprep.subr.bf16.mxu0 %v1421
      %2069 = vmatpush1.bf16.msra.mxu0 %v1420
      %2070 = vmatprep.subr.bf16.mxu0 %v1427
      %2071 = vmatpush1.bf16.msra.mxu0 %v1426
      %2072 = vmatprep.subr.bf16.mxu0 %v1433
      %2073 = vmatpush1.bf16.msra.mxu0 %v1432
      %2074 = vmatprep.subr.bf16.mxu0 %v1439
      %2075 = vmatpush1.bf16.msra.mxu0 %v1438
      %2076 = vmatprep.subr.bf16.mxu0 %v1445
      %2077 = vmatpush1.bf16.msra.mxu0 %v1444
      %2078 = vmatprep.subr.bf16.mxu0 %v1451
      %2079 = vmatpush1.bf16.msra.mxu0 %v1450
      %2080 = vmatprep.subr.bf16.mxu0 %v1457
      %2081 = vmatpush1.bf16.msra.mxu0 %v1456
      %2082 = vmatprep.subr.bf16.mxu0 %v1463
      %2083 = vmatpush1.bf16.msra.mxu0 %v1462
      %2084 = vmatprep.subr.bf16.mxu0 %v1469
      %2085 = vmatpush1.bf16.msra.mxu0 %v1468
      %2086 = vmatprep.mubr.bf16.mxu0 %v545
      %2087 = vmatmul.mubr.bf16.gmra.mrb[0].mxu0 %v543
      %v2088 = vpop.f32.mrb[0].mxu0
      %v2089 = vadd.f32 %v2048, %v2088
      %v2090 = vpop.f32.mrb[0].mxu0
      %v2091 = vadd.f32 %v2050, %v2090
      %v2092 = vpop.f32.mrb[0].mxu0
      %v2093 = vpop.f32.mrb[0].mxu0
      %2094 = vdwg.mxu0
      %2095 = vmatprep.subr.bf16.mxu0 %v1475
      %2096 = vmatpush1.bf16.msra.mxu0 %v1474
      %2097 = vmatprep.subr.bf16.mxu0 %v1481
      %2098 = vmatpush1.bf16.msra.mxu0 %v1480
      %2099 = vmatprep.subr.bf16.mxu0 %v1487
      %2100 = vmatpush1.bf16.msra.mxu0 %v1486
      %2101 = vmatprep.subr.bf16.mxu0 %v1493
      %2102 = vmatpush1.bf16.msra.mxu0 %v1492
      %2103 = vmatprep.subr.bf16.mxu0 %v1499
      %2104 = vmatpush1.bf16.msra.mxu0 %v1498
      %2105 = vmatprep.subr.bf16.mxu0 %v1505
      %2106 = vmatpush1.bf16.msra.mxu0 %v1504
      %2107 = vmatprep.subr.bf16.mxu0 %v1511
      %2108 = vmatpush1.bf16.msra.mxu0 %v1510
      %2109 = vmatprep.subr.bf16.mxu0 %v1517
      %2110 = vmatpush1.bf16.msra.mxu0 %v1516
      %2111 = vmatprep.subr.bf16.mxu0 0
      %2112 = vmatpush1.bf16.msra.mxu0 0
      %2113 = vmatprep.subr.bf16.mxu0 0
      %2114 = vmatpush1.bf16.msra.mxu0 0
      %2115 = vmatprep.subr.bf16.mxu0 0
      %2116 = vmatpush1.bf16.msra.mxu0 0
      %2117 = vmatprep.subr.bf16.mxu0 0
      %2118 = vmatpush1.bf16.msra.mxu0 0
      %2119 = vmatprep.subr.bf16.mxu0 0
      %2120 = vmatpush1.bf16.msra.mxu0 0
      %2121 = vmatprep.subr.bf16.mxu0 0
      %2122 = vmatpush1.bf16.msra.mxu0 0
      %2123 = vmatprep.subr.bf16.mxu0 0
      %2124 = vmatpush1.bf16.msra.mxu0 0
      %2125 = vmatprep.subr.bf16.mxu0 0
      %2126 = vmatpush1.bf16.msra.mxu0 0
      %2127 = vmatprep.mubr.bf16.mxu0 0
      %2128 = vmatmul.mubr.bf16.gmra.mrb[0].mxu0 %v552
      %v2129 = vpop.f32.mrb[0].mxu0
      %v2130 = vadd.f32 %v2089, %v2129
      %v2131 = vpop.f32.mrb[0].mxu0
      %v2132 = vadd.f32 %v2091, %v2131
      %v2133 = vpop.f32.mrb[0].mxu0
      %v2134 = vpop.f32.mrb[0].mxu0
      %2135 = vdwg.mxu0
      %vm2136 = vcmask 1043456
      %v2137 = vsel %vm2136, %v1884, 0.0
      %v2138 = vsel %vm2136, %v1886, 0.0
      %v2139 = vadd.f32 %v2137, %v2138
      %v2140 = vsel %vm2136, %v2007, 0.0
      %v2141 = vadd.f32 %v2139, %v2140
      %v2142 = vsel %vm2136, %v2009, 0.0
      %v2143 = vadd.f32 %v2141, %v2142
      %v2144 = vsel %vm2136, %v2130, 0.0
      %v2145 = vadd.f32 %v2143, %v2144
      %v2146 = vsel %vm2136, %v2132, 0.0
      %v2147 = vadd.f32 %v2145, %v2146
      %2148 = vadd.xlane.f32.xlu0 %v2147
      %v2149 = vpop.xlane.xlu0 %2148
      %v2150 = vrcp.pop 768.0
      %v2151 = vmul.f32 %v2149, %v2150
      %v2152 = vsub.f32 %v1884, %v2151
      %v2153 = vsub.f32 %v1886, %v2151
      %v2154 = vsub.f32 %v2007, %v2151
      %v2155 = vsub.f32 %v2009, %v2151
      %v2156 = vsub.f32 %v2130, %v2151
      %v2157 = vsub.f32 %v2132, %v2151
      %v2158 = vmul.f32 %v2152, %v2152
      %v2159 = vmul.f32 %v2153, %v2153
      %v2160 = vmul.f32 %v2154, %v2154
      %v2161 = vmul.f32 %v2155, %v2155
      %v2162 = vmul.f32 %v2156, %v2156
      %v2163 = vmul.f32 %v2157, %v2157
      %v2164 = vsel %vm2136, %v2158, 0.0
      %v2165 = vsel %vm2136, %v2159, 0.0
      %v2166 = vadd.f32 %v2164, %v2165
      %v2167 = vsel %vm2136, %v2160, 0.0
      %v2168 = vadd.f32 %v2166, %v2167
      %v2169 = vsel %vm2136, %v2161, 0.0
      %v2170 = vadd.f32 %v2168, %v2169
      %v2171 = vsel %vm2136, %v2162, 0.0
      %v2172 = vadd.f32 %v2170, %v2171
      %v2173 = vsel %vm2136, %v2163, 0.0
      %v2174 = vadd.f32 %v2172, %v2173
      %2175 = vadd.xlane.f32.xlu0 %v2174
      %v2176 = vpop.xlane.xlu0 %2175
      %v2177 = vmul.f32 %v2176, %v2150
      %v2178 = vadd.f32 %v2177, 1e-06
      %v2179 = vrsqrt.pop %v2178
      %v2180 = vmul.f32 %v2152, %v2179
      %v2181 = vmul.f32 %v2153, %v2179
      %v2182 = vmul.f32 %v2154, %v2179
      %v2183 = vmul.f32 %v2155, %v2179
      %v2184 = vmul.f32 %v2156, %v2179
      %v2185 = vmul.f32 %v2157, %v2179
      %v2186 = vld [vmem:[%s3] sm:$0x3f]
      %v2188 = vlaneseq
      %v2189 = vshrl.u32 %v2188, 7
      %v2190 = vsub.s32 0, %v2189
      %v2191 = vrot.slane %v2186, %v2190
      %v2192 = vlaneseq
      %v2193 = vshrl.u32 %v2192, 7
      %v2194 = vsub.s32 1, %v2193
      %v2195 = vrot.slane %v2186, %v2194
      %v2196 = vlaneseq
      %v2197 = vshrl.u32 %v2196, 7
      %v2198 = vsub.s32 2, %v2197
      %v2199 = vrot.slane %v2186, %v2198
      %v2200 = vlaneseq
      %v2201 = vshrl.u32 %v2200, 7
      %v2202 = vsub.s32 3, %v2201
      %v2203 = vrot.slane %v2186, %v2202
      %v2204 = vlaneseq
      %v2205 = vshrl.u32 %v2204, 7
      %v2206 = vsub.s32 4, %v2205
      %v2207 = vrot.slane %v2186, %v2206
      %v2208 = vlaneseq
      %v2209 = vshrl.u32 %v2208, 7
      %v2210 = vsub.s32 5, %v2209
      %v2211 = vrot.slane %v2186, %v2210
      %v2218 = vmul.f32 %v2180, %v2191
      %v2219 = vmul.f32 %v2181, %v2195
      %v2220 = vmul.f32 %v2182, %v2199
      %v2221 = vmul.f32 %v2183, %v2203
      %v2222 = vmul.f32 %v2184, %v2207
      %v2223 = vmul.f32 %v2185, %v2211
      %v2224 = vld [vmem:[%s4] sm:$0x3f]
      %v2226 = vlaneseq
      %v2227 = vshrl.u32 %v2226, 7
      %v2228 = vsub.s32 0, %v2227
      %v2229 = vrot.slane %v2224, %v2228
      %v2230 = vlaneseq
      %v2231 = vshrl.u32 %v2230, 7
      %v2232 = vsub.s32 1, %v2231
      %v2233 = vrot.slane %v2224, %v2232
      %v2234 = vlaneseq
      %v2235 = vshrl.u32 %v2234, 7
      %v2236 = vsub.s32 2, %v2235
      %v2237 = vrot.slane %v2224, %v2236
      %v2238 = vlaneseq
      %v2239 = vshrl.u32 %v2238, 7
      %v2240 = vsub.s32 3, %v2239
      %v2241 = vrot.slane %v2224, %v2240
      %v2242 = vlaneseq
      %v2243 = vshrl.u32 %v2242, 7
      %v2244 = vsub.s32 4, %v2243
      %v2245 = vrot.slane %v2224, %v2244
      %v2246 = vlaneseq
      %v2247 = vshrl.u32 %v2246, 7
      %v2248 = vsub.s32 5, %v2247
      %v2249 = vrot.slane %v2224, %v2248
      %v2256 = vadd.f32 %v2218, %v2229
      %v2257 = vadd.f32 %v2219, %v2233
      %v2258 = vadd.f32 %v2220, %v2237
      %v2259 = vadd.f32 %v2221, %v2241
      %v2260 = vadd.f32 %v2222, %v2245
      %v2261 = vadd.f32 %v2223, %v2249
      %2262 = vxpose.xlu0.b32.start [1/16] %v2256, 128
      %2263 = vxpose.xlu0.b32.cont [2/16] 0.0, 128
      %2264 = vxpose.xlu0.b32.cont [3/16] 0.0, 128
      %2265 = vxpose.xlu0.b32.cont [4/16] 0.0, 128
      %2266 = vxpose.xlu0.b32.cont [5/16] 0.0, 128
      %2267 = vxpose.xlu0.b32.cont [6/16] 0.0, 128
      %2268 = vxpose.xlu0.b32.cont [7/16] 0.0, 128
      %2269 = vxpose.xlu0.b32.cont [8/16] 0.0, 128
      %2270 = vxpose.xlu0.b32.cont [9/16] 0.0, 128
      %2271 = vxpose.xlu0.b32.cont [10/16] 0.0, 128
      %2272 = vxpose.xlu0.b32.cont [11/16] 0.0, 128
      %2273 = vxpose.xlu0.b32.cont [12/16] 0.0, 128
      %2274 = vxpose.xlu0.b32.cont [13/16] 0.0, 128
      %2275 = vxpose.xlu0.b32.cont [14/16] 0.0, 128
      %2276 = vxpose.xlu0.b32.cont [15/16] 0.0, 128
      %2277 = vxpose.xlu0.b32.end [16/16] 0.0, 128
      %v2278 = vpop.trf.xlu0
      %v2279 = vpop.trf.xlu0
      %v2280 = vpop.trf.xlu0
      %v2281 = vpop.trf.xlu0
      %v2282 = vpop.trf.xlu0
      %v2283 = vpop.trf.xlu0
      %v2284 = vpop.trf.xlu0
      %v2285 = vpop.trf.xlu0
      %v2286 = vpop.trf.xlu0
      %v2287 = vpop.trf.xlu0
      %v2288 = vpop.trf.xlu0
      %v2289 = vpop.trf.xlu0
      %v2290 = vpop.trf.xlu0
      %v2291 = vpop.trf.xlu0
      %v2292 = vpop.trf.xlu0
      %v2293 = vpop.trf.xlu0
      %2294 = vxpose.xlu0.b32.start [1/16] %v2257, 128
      %2295 = vxpose.xlu0.b32.cont [2/16] 0.0, 128
      %2296 = vxpose.xlu0.b32.cont [3/16] 0.0, 128
      %2297 = vxpose.xlu0.b32.cont [4/16] 0.0, 128
      %2298 = vxpose.xlu0.b32.cont [5/16] 0.0, 128
      %2299 = vxpose.xlu0.b32.cont [6/16] 0.0, 128
      %2300 = vxpose.xlu0.b32.cont [7/16] 0.0, 128
      %2301 = vxpose.xlu0.b32.cont [8/16] 0.0, 128
      %2302 = vxpose.xlu0.b32.cont [9/16] 0.0, 128
      %2303 = vxpose.xlu0.b32.cont [10/16] 0.0, 128
      %2304 = vxpose.xlu0.b32.cont [11/16] 0.0, 128
      %2305 = vxpose.xlu0.b32.cont [12/16] 0.0, 128
      %2306 = vxpose.xlu0.b32.cont [13/16] 0.0, 128
      %2307 = vxpose.xlu0.b32.cont [14/16] 0.0, 128
      %2308 = vxpose.xlu0.b32.cont [15/16] 0.0, 128
      %2309 = vxpose.xlu0.b32.end [16/16] 0.0, 128
      %v2310 = vpop.trf.xlu0
      %v2311 = vpop.trf.xlu0
      %v2312 = vpop.trf.xlu0
      %v2313 = vpop.trf.xlu0
      %v2314 = vpop.trf.xlu0
      %v2315 = vpop.trf.xlu0
      %v2316 = vpop.trf.xlu0
      %v2317 = vpop.trf.xlu0
      %v2318 = vpop.trf.xlu0
      %v2319 = vpop.trf.xlu0
      %v2320 = vpop.trf.xlu0
      %v2321 = vpop.trf.xlu0
      %v2322 = vpop.trf.xlu0
      %v2323 = vpop.trf.xlu0
      %v2324 = vpop.trf.xlu0
      %v2325 = vpop.trf.xlu0
      %2326 = vxpose.xlu0.b32.start [1/16] %v2258, 128
      %2327 = vxpose.xlu0.b32.cont [2/16] 0.0, 128
      %2328 = vxpose.xlu0.b32.cont [3/16] 0.0, 128
      %2329 = vxpose.xlu0.b32.cont [4/16] 0.0, 128
      %2330 = vxpose.xlu0.b32.cont [5/16] 0.0, 128
      %2331 = vxpose.xlu0.b32.cont [6/16] 0.0, 128
      %2332 = vxpose.xlu0.b32.cont [7/16] 0.0, 128
      %2333 = vxpose.xlu0.b32.cont [8/16] 0.0, 128
      %2334 = vxpose.xlu0.b32.cont [9/16] 0.0, 128
      %2335 = vxpose.xlu0.b32.cont [10/16] 0.0, 128
      %2336 = vxpose.xlu0.b32.cont [11/16] 0.0, 128
      %2337 = vxpose.xlu0.b32.cont [12/16] 0.0, 128
      %2338 = vxpose.xlu0.b32.cont [13/16] 0.0, 128
      %2339 = vxpose.xlu0.b32.cont [14/16] 0.0, 128
      %2340 = vxpose.xlu0.b32.cont [15/16] 0.0, 128
      %2341 = vxpose.xlu0.b32.end [16/16] 0.0, 128
      %v2342 = vpop.trf.xlu0
      %v2343 = vpop.trf.xlu0
      %v2344 = vpop.trf.xlu0
      %v2345 = vpop.trf.xlu0
      %v2346 = vpop.trf.xlu0
      %v2347 = vpop.trf.xlu0
      %v2348 = vpop.trf.xlu0
      %v2349 = vpop.trf.xlu0
      %v2350 = vpop.trf.xlu0
      %v2351 = vpop.trf.xlu0
      %v2352 = vpop.trf.xlu0
      %v2353 = vpop.trf.xlu0
      %v2354 = vpop.trf.xlu0
      %v2355 = vpop.trf.xlu0
      %v2356 = vpop.trf.xlu0
      %v2357 = vpop.trf.xlu0
      %2358 = vxpose.xlu0.b32.start [1/16] %v2259, 128
      %2359 = vxpose.xlu0.b32.cont [2/16] 0.0, 128
      %2360 = vxpose.xlu0.b32.cont [3/16] 0.0, 128
      %2361 = vxpose.xlu0.b32.cont [4/16] 0.0, 128
      %2362 = vxpose.xlu0.b32.cont [5/16] 0.0, 128
      %2363 = vxpose.xlu0.b32.cont [6/16] 0.0, 128
      %2364 = vxpose.xlu0.b32.cont [7/16] 0.0, 128
      %2365 = vxpose.xlu0.b32.cont [8/16] 0.0, 128
      %2366 = vxpose.xlu0.b32.cont [9/16] 0.0, 128
      %2367 = vxpose.xlu0.b32.cont [10/16] 0.0, 128
      %2368 = vxpose.xlu0.b32.cont [11/16] 0.0, 128
      %2369 = vxpose.xlu0.b32.cont [12/16] 0.0, 128
      %2370 = vxpose.xlu0.b32.cont [13/16] 0.0, 128
      %2371 = vxpose.xlu0.b32.cont [14/16] 0.0, 128
      %2372 = vxpose.xlu0.b32.cont [15/16] 0.0, 128
      %2373 = vxpose.xlu0.b32.end [16/16] 0.0, 128
      %v2374 = vpop.trf.xlu0
      %v2375 = vpop.trf.xlu0
      %v2376 = vpop.trf.xlu0
      %v2377 = vpop.trf.xlu0
      %v2378 = vpop.trf.xlu0
      %v2379 = vpop.trf.xlu0
      %v2380 = vpop.trf.xlu0
      %v2381 = vpop.trf.xlu0
      %v2382 = vpop.trf.xlu0
      %v2383 = vpop.trf.xlu0
      %v2384 = vpop.trf.xlu0
      %v2385 = vpop.trf.xlu0
      %v2386 = vpop.trf.xlu0
      %v2387 = vpop.trf.xlu0
      %v2388 = vpop.trf.xlu0
      %v2389 = vpop.trf.xlu0
      %2390 = vxpose.xlu0.b32.start [1/16] %v2260, 128
      %2391 = vxpose.xlu0.b32.cont [2/16] 0.0, 128
      %2392 = vxpose.xlu0.b32.cont [3/16] 0.0, 128
      %2393 = vxpose.xlu0.b32.cont [4/16] 0.0, 128
      %2394 = vxpose.xlu0.b32.cont [5/16] 0.0, 128
      %2395 = vxpose.xlu0.b32.cont [6/16] 0.0, 128
      %2396 = vxpose.xlu0.b32.cont [7/16] 0.0, 128
      %2397 = vxpose.xlu0.b32.cont [8/16] 0.0, 128
      %2398 = vxpose.xlu0.b32.cont [9/16] 0.0, 128
      %2399 = vxpose.xlu0.b32.cont [10/16] 0.0, 128
      %2400 = vxpose.xlu0.b32.cont [11/16] 0.0, 128
      %2401 = vxpose.xlu0.b32.cont [12/16] 0.0, 128
      %2402 = vxpose.xlu0.b32.cont [13/16] 0.0, 128
      %2403 = vxpose.xlu0.b32.cont [14/16] 0.0, 128
      %2404 = vxpose.xlu0.b32.cont [15/16] 0.0, 128
      %2405 = vxpose.xlu0.b32.end [16/16] 0.0, 128
      %v2406 = vpop.trf.xlu0
      %v2407 = vpop.trf.xlu0
      %v2408 = vpop.trf.xlu0
      %v2409 = vpop.trf.xlu0
      %v2410 = vpop.trf.xlu0
      %v2411 = vpop.trf.xlu0
      %v2412 = vpop.trf.xlu0
      %v2413 = vpop.trf.xlu0
      %v2414 = vpop.trf.xlu0
      %v2415 = vpop.trf.xlu0
      %v2416 = vpop.trf.xlu0
      %v2417 = vpop.trf.xlu0
      %v2418 = vpop.trf.xlu0
      %v2419 = vpop.trf.xlu0
      %v2420 = vpop.trf.xlu0
      %v2421 = vpop.trf.xlu0
      %2422 = vxpose.xlu0.b32.start [1/16] %v2261, 128
      %2423 = vxpose.xlu0.b32.cont [2/16] 0.0, 128
      %2424 = vxpose.xlu0.b32.cont [3/16] 0.0, 128
      %2425 = vxpose.xlu0.b32.cont [4/16] 0.0, 128
      %2426 = vxpose.xlu0.b32.cont [5/16] 0.0, 128
      %2427 = vxpose.xlu0.b32.cont [6/16] 0.0, 128
      %2428 = vxpose.xlu0.b32.cont [7/16] 0.0, 128
      %2429 = vxpose.xlu0.b32.cont [8/16] 0.0, 128
      %2430 = vxpose.xlu0.b32.cont [9/16] 0.0, 128
      %2431 = vxpose.xlu0.b32.cont [10/16] 0.0, 128
      %2432 = vxpose.xlu0.b32.cont [11/16] 0.0, 128
      %2433 = vxpose.xlu0.b32.cont [12/16] 0.0, 128
      %2434 = vxpose.xlu0.b32.cont [13/16] 0.0, 128
      %2435 = vxpose.xlu0.b32.cont [14/16] 0.0, 128
      %2436 = vxpose.xlu0.b32.cont [15/16] 0.0, 128
      %2437 = vxpose.xlu0.b32.end [16/16] 0.0, 128
      %v2438 = vpop.trf.xlu0
      %v2439 = vpop.trf.xlu0
      %v2440 = vpop.trf.xlu0
      %v2441 = vpop.trf.xlu0
      %v2442 = vpop.trf.xlu0
      %v2443 = vpop.trf.xlu0
      %v2444 = vpop.trf.xlu0
      %v2445 = vpop.trf.xlu0
      %v2446 = vpop.trf.xlu0
      %v2447 = vpop.trf.xlu0
      %v2448 = vpop.trf.xlu0
      %v2449 = vpop.trf.xlu0
      %v2450 = vpop.trf.xlu0
      %v2451 = vpop.trf.xlu0
      %v2452 = vpop.trf.xlu0
      %v2453 = vpop.trf.xlu0
      %vm2454 = vcmask 31744
      %2455 = vst.msk [vmem:[%s278] sm:$0xff] %vm2454, %v2278
      %2456 = vst.msk [vmem:[%s278 + $0x8] sm:$0xff] %vm2454, %v2279
      %2457 = vst.msk [vmem:[%s278 + $0x10] sm:$0xff] %vm2454, %v2280
      %2458 = vst.msk [vmem:[%s278 + $0x18] sm:$0xff] %vm2454, %v2281
      %2459 = vst.msk [vmem:[%s278 + $0x20] sm:$0xff] %vm2454, %v2282
      %2460 = vst.msk [vmem:[%s278 + $0x28] sm:$0xff] %vm2454, %v2283
      %2461 = vst.msk [vmem:[%s278 + $0x30] sm:$0xff] %vm2454, %v2284
      %2462 = vst.msk [vmem:[%s278 + $0x38] sm:$0xff] %vm2454, %v2285
      %2463 = vst.msk [vmem:[%s278 + $0x40] sm:$0xff] %vm2454, %v2286
      %2464 = vst.msk [vmem:[%s278 + $0x48] sm:$0xff] %vm2454, %v2287
      %2465 = vst.msk [vmem:[%s278 + $0x50] sm:$0xff] %vm2454, %v2288
      %2466 = vst.msk [vmem:[%s278 + $0x58] sm:$0xff] %vm2454, %v2289
      %2467 = vst.msk [vmem:[%s278 + $0x60] sm:$0xff] %vm2454, %v2290
      %2468 = vst.msk [vmem:[%s278 + $0x68] sm:$0xff] %vm2454, %v2291
      %2469 = vst.msk [vmem:[%s278 + $0x70] sm:$0xff] %vm2454, %v2292
      %2470 = vst.msk [vmem:[%s278 + $0x78] sm:$0xff] %vm2454, %v2293
      %2471 = vst.msk [vmem:[%s278 + $0x80] sm:$0xff] %vm2454, %v2310
      %2472 = vst.msk [vmem:[%s278 + $0x88] sm:$0xff] %vm2454, %v2311
      %2473 = vst.msk [vmem:[%s278 + $0x90] sm:$0xff] %vm2454, %v2312
      %2474 = vst.msk [vmem:[%s278 + $0x98] sm:$0xff] %vm2454, %v2313
      %2475 = vst.msk [vmem:[%s278 + $0xa0] sm:$0xff] %vm2454, %v2314
      %2476 = vst.msk [vmem:[%s278 + $0xa8] sm:$0xff] %vm2454, %v2315
      %2477 = vst.msk [vmem:[%s278 + $0xb0] sm:$0xff] %vm2454, %v2316
      %2478 = vst.msk [vmem:[%s278 + $0xb8] sm:$0xff] %vm2454, %v2317
      %2479 = vst.msk [vmem:[%s278 + $0xc0] sm:$0xff] %vm2454, %v2318
      %2480 = vst.msk [vmem:[%s278 + $0xc8] sm:$0xff] %vm2454, %v2319
      %2481 = vst.msk [vmem:[%s278 + $0xd0] sm:$0xff] %vm2454, %v2320
      %2482 = vst.msk [vmem:[%s278 + $0xd8] sm:$0xff] %vm2454, %v2321
      %2483 = vst.msk [vmem:[%s278 + $0xe0] sm:$0xff] %vm2454, %v2322
      %2484 = vst.msk [vmem:[%s278 + $0xe8] sm:$0xff] %vm2454, %v2323
      %2485 = vst.msk [vmem:[%s278 + $0xf0] sm:$0xff] %vm2454, %v2324
      %2486 = vst.msk [vmem:[%s278 + $0xf8] sm:$0xff] %vm2454, %v2325
      %2487 = vst.msk [vmem:[%s278 + $0x100] sm:$0xff] %vm2454, %v2342
      %2488 = vst.msk [vmem:[%s278 + $0x108] sm:$0xff] %vm2454, %v2343
      %2489 = vst.msk [vmem:[%s278 + $0x110] sm:$0xff] %vm2454, %v2344
      %2490 = vst.msk [vmem:[%s278 + $0x118] sm:$0xff] %vm2454, %v2345
      %2491 = vst.msk [vmem:[%s278 + $0x120] sm:$0xff] %vm2454, %v2346
      %2492 = vst.msk [vmem:[%s278 + $0x128] sm:$0xff] %vm2454, %v2347
      %2493 = vst.msk [vmem:[%s278 + $0x130] sm:$0xff] %vm2454, %v2348
      %2494 = vst.msk [vmem:[%s278 + $0x138] sm:$0xff] %vm2454, %v2349
      %2495 = vst.msk [vmem:[%s278 + $0x140] sm:$0xff] %vm2454, %v2350
      %2496 = vst.msk [vmem:[%s278 + $0x148] sm:$0xff] %vm2454, %v2351
      %2497 = vst.msk [vmem:[%s278 + $0x150] sm:$0xff] %vm2454, %v2352
      %2498 = vst.msk [vmem:[%s278 + $0x158] sm:$0xff] %vm2454, %v2353
      %2499 = vst.msk [vmem:[%s278 + $0x160] sm:$0xff] %vm2454, %v2354
      %2500 = vst.msk [vmem:[%s278 + $0x168] sm:$0xff] %vm2454, %v2355
      %2501 = vst.msk [vmem:[%s278 + $0x170] sm:$0xff] %vm2454, %v2356
      %2502 = vst.msk [vmem:[%s278 + $0x178] sm:$0xff] %vm2454, %v2357
      %2503 = vst.msk [vmem:[%s278 + $0x180] sm:$0xff] %vm2454, %v2374
      %2504 = vst.msk [vmem:[%s278 + $0x188] sm:$0xff] %vm2454, %v2375
      %2505 = vst.msk [vmem:[%s278 + $0x190] sm:$0xff] %vm2454, %v2376
      %2506 = vst.msk [vmem:[%s278 + $0x198] sm:$0xff] %vm2454, %v2377
      %2507 = vst.msk [vmem:[%s278 + $0x1a0] sm:$0xff] %vm2454, %v2378
      %2508 = vst.msk [vmem:[%s278 + $0x1a8] sm:$0xff] %vm2454, %v2379
      %2509 = vst.msk [vmem:[%s278 + $0x1b0] sm:$0xff] %vm2454, %v2380
      %2510 = vst.msk [vmem:[%s278 + $0x1b8] sm:$0xff] %vm2454, %v2381
      %2511 = vst.msk [vmem:[%s278 + $0x1c0] sm:$0xff] %vm2454, %v2382
      %2512 = vst.msk [vmem:[%s278 + $0x1c8] sm:$0xff] %vm2454, %v2383
      %2513 = vst.msk [vmem:[%s278 + $0x1d0] sm:$0xff] %vm2454, %v2384
      %2514 = vst.msk [vmem:[%s278 + $0x1d8] sm:$0xff] %vm2454, %v2385
      %2515 = vst.msk [vmem:[%s278 + $0x1e0] sm:$0xff] %vm2454, %v2386
      %2516 = vst.msk [vmem:[%s278 + $0x1e8] sm:$0xff] %vm2454, %v2387
      %2517 = vst.msk [vmem:[%s278 + $0x1f0] sm:$0xff] %vm2454, %v2388
      %2518 = vst.msk [vmem:[%s278 + $0x1f8] sm:$0xff] %vm2454, %v2389
      %2519 = vst.msk [vmem:[%s278 + $0x200] sm:$0xff] %vm2454, %v2406
      %2520 = vst.msk [vmem:[%s278 + $0x208] sm:$0xff] %vm2454, %v2407
      %2521 = vst.msk [vmem:[%s278 + $0x210] sm:$0xff] %vm2454, %v2408
      %2522 = vst.msk [vmem:[%s278 + $0x218] sm:$0xff] %vm2454, %v2409
      %2523 = vst.msk [vmem:[%s278 + $0x220] sm:$0xff] %vm2454, %v2410
      %2524 = vst.msk [vmem:[%s278 + $0x228] sm:$0xff] %vm2454, %v2411
      %2525 = vst.msk [vmem:[%s278 + $0x230] sm:$0xff] %vm2454, %v2412
      %2526 = vst.msk [vmem:[%s278 + $0x238] sm:$0xff] %vm2454, %v2413
      %2527 = vst.msk [vmem:[%s278 + $0x240] sm:$0xff] %vm2454, %v2414
      %2528 = vst.msk [vmem:[%s278 + $0x248] sm:$0xff] %vm2454, %v2415
      %2529 = vst.msk [vmem:[%s278 + $0x250] sm:$0xff] %vm2454, %v2416
      %2530 = vst.msk [vmem:[%s278 + $0x258] sm:$0xff] %vm2454, %v2417
      %2531 = vst.msk [vmem:[%s278 + $0x260] sm:$0xff] %vm2454, %v2418
      %2532 = vst.msk [vmem:[%s278 + $0x268] sm:$0xff] %vm2454, %v2419
      %2533 = vst.msk [vmem:[%s278 + $0x270] sm:$0xff] %vm2454, %v2420
      %2534 = vst.msk [vmem:[%s278 + $0x278] sm:$0xff] %vm2454, %v2421
      %2535 = vst.msk [vmem:[%s278 + $0x280] sm:$0xff] %vm2454, %v2438
      %2536 = vst.msk [vmem:[%s278 + $0x288] sm:$0xff] %vm2454, %v2439
      %2537 = vst.msk [vmem:[%s278 + $0x290] sm:$0xff] %vm2454, %v2440
      %2538 = vst.msk [vmem:[%s278 + $0x298] sm:$0xff] %vm2454, %v2441
      %2539 = vst.msk [vmem:[%s278 + $0x2a0] sm:$0xff] %vm2454, %v2442
      %2540 = vst.msk [vmem:[%s278 + $0x2a8] sm:$0xff] %vm2454, %v2443
      %2541 = vst.msk [vmem:[%s278 + $0x2b0] sm:$0xff] %vm2454, %v2444
      %2542 = vst.msk [vmem:[%s278 + $0x2b8] sm:$0xff] %vm2454, %v2445
      %2543 = vst.msk [vmem:[%s278 + $0x2c0] sm:$0xff] %vm2454, %v2446
      %2544 = vst.msk [vmem:[%s278 + $0x2c8] sm:$0xff] %vm2454, %v2447
      %2545 = vst.msk [vmem:[%s278 + $0x2d0] sm:$0xff] %vm2454, %v2448
      %2546 = vst.msk [vmem:[%s278 + $0x2d8] sm:$0xff] %vm2454, %v2449
      %2547 = vst.msk [vmem:[%s278 + $0x2e0] sm:$0xff] %vm2454, %v2450
      %2548 = vst.msk [vmem:[%s278 + $0x2e8] sm:$0xff] %vm2454, %v2451
      %2549 = vst.msk [vmem:[%s278 + $0x2f0] sm:$0xff] %vm2454, %v2452
      %2550 = vst.msk [vmem:[%s278 + $0x2f8] sm:$0xff] %vm2454, %v2453
      %p2551 = scmp.lt.s32.totalorder %s21, 1
      %s2552 = scalar_select %p2551, %s21, 1
      %p2553 = scmp.lt.s32.totalorder %s20, 0
      %s2554 = scalar_select %p2553, %s20, 0
      %s2555 = smul.addr %s2552, 96
      %s2556 = sadd.s32 %s2554, %s2555
      %s2557 = smul.addr %s2556, 8
      %s2558 = scalar_lea.vmem %s5, %s2557
      // Predicated region
      $region41: #{dinov2_base_stage0.1} parent=39 // pred_check
        %p2559 = pneg %p165
      $region42: #{dinov2_base_stage0.1} parent=39 // pred_check_branch
        %2561 = sbr.rel (%p2559) target = $region44
      $region43: #{dinov2_base_stage0.1} parent=39 // pred_region
        _
      $region44: #{dinov2_base_stage0.1} parent=39 // pred_fallthru
        _
    $region40: #{dinov2_base_stage0.1} parent=5 // pred_fallthru
      _
    %p2562 = scmp.le.s32.totalorder 2, %s11
    // Predicated region
    $region45: #{dinov2_base_stage0.1} parent=5 // pred_check
      %p2563 = pneg %p2562
    $region46: #{dinov2_base_stage0.1} parent=5 // pred_check_branch
      %2565 = sbr.rel (%p2563) target = $region48
    $region47: #{dinov2_base_stage0.1} parent=5 // pred_region
      %s2566 = ssub.s32 %s11, 2
      // Predicated region
      $region49: #{dinov2_base_stage0.1} parent=47 // pred_check
        %p2567 = pneg %p171
      $region50: #{dinov2_base_stage0.1} parent=47 // pred_check_branch
        %2569 = sbr.rel (%p2567) target = $region52
      $region51: #{dinov2_base_stage0.1} parent=47 // pred_region
        %p2570 = scmp.lt.s32.totalorder %s23, 1
        %s2571 = scalar_select %p2570, %s23, 1
        %p2572 = scmp.lt.s32.totalorder %s22, 0
        %s2573 = scalar_select %p2572, %s22, 0
        %s2574 = smul.addr %s2571, 96
        %s2575 = sadd.s32 %s2573, %s2574
        %s2576 = smul.addr %s2575, 8
        %s2577 = scalar_lea.vmem %s5, %s2576
      $region52: #{dinov2_base_stage0.1} parent=47 // pred_fallthru
        _
    $region48: #{dinov2_base_stage0.1} parent=5 // pred_fallthru
      _
  $region6: #{dinov2_base_stage0.1} parent=0 // loop_footer
    %s15 = sadd.s32 1, %s11
  $region7: #{dinov2_base_stage0.1} parent=0 // loop_footer_branch
    %10 = sbr.rel target = $region3
  $region8: #{dinov2_base_stage0.1} parent=0 // loop_exit
    _

</llo_original>
